<compile_context>
chip_gen: v6e
topology: v6e:2x2x1
jax: 0.10.0
libtpu: 0.0.40
codegen_flags: <defaults>
</compile_context>

<pallas_src>
import math

import jax
import jax.numpy as jnp
from jax.experimental import pallas as pl
from jax.experimental.pallas import tpu as pltpu


# --------------------------- Fused wavefront kernel ---------------------------

def _wesad_lstm_wavefront_kernel(x_ref, h0_ref, c0_ref, wih0_ref, whh0_ref,
                                 b0_ref, wstk_ref, brest_ref, fcw_ref, fcb_ref,
                                 out_ref, gx_ref, hout_ref):
    """Whole forward pass: L stacked LSTM layers (wavefront) + Linear, in VMEM.

    x_ref    : (T*B, F)   bf16  flattened input sequence
    h0_ref   : (L, B, H)  f32   initial hidden states
    c0_ref   : (L, B, H)  f32   initial cell states
    wih0_ref : (F, 4H)    bf16  layer-0 W_ih^T (g-gate cols pre-scaled by 2)
    whh0_ref : (H, 4H)    bf16  layer-0 W_hh^T (g-gate cols pre-scaled by 2)
    b0_ref   : (1, 4H)    f32   layer-0 b_ih + b_hh (g-gate cols pre-scaled)
    wstk_ref : (max(L-1,1), 2H, 4H) bf16  stacked [W_ih^T ; W_hh^T], layers 1..
    brest_ref: (max(L-1,1), 4H)     f32   b_ih + b_hh, layers 1..
    fcw_ref  : (H, 128)   bf16  fc weight^T zero-padded to 128 lanes
    fcb_ref  : (1, 128)   f32   fc bias zero-padded to 128 lanes
    out_ref  : (T*B, 128) f32   lane-dense output slab (valid cols = [:O])
    gx_ref   : (T*B, 4H)  f32   VMEM scratch: hoisted layer-0 projection
    hout_ref : (T*B, H)   f32   VMEM scratch: last layer's h per timestep
    """
    L, B, H = h0_ref.shape
    TB = x_ref.shape[0]
    T = TB // B

    # 1) Hoisted layer-0 input projection for the whole sequence: one big bf16
    #    MXU matmul (f32 accumulate), staged in VMEM scratch so the unrolled
    #    recurrence only keeps one (B, 4H) slice live at a time.
    gx_ref[...] = (jnp.dot(x_ref[...], wih0_ref[...],
                           preferred_element_type=jnp.float32)
                   + b0_ref[...])

    brest = brest_ref[...]                                  # (max(L-1,1), 4H)

    h_state = [h0_ref[l] for l in range(L)]                 # f32 (B, H)
    c_state = [c0_ref[l] for l in range(L)]

    def lstm_cell(g, c):
        # g-gate columns were pre-scaled by 2 in the wrapper, so
        # tanh(z) = 2*sigmoid(2z) - 1: one full-vreg sigmoid per step (EUP),
        # cell candidate recovered with a single VPU fma.
        sig = jax.nn.sigmoid(g)                             # (B, 4H)
        i_g = sig[:, 0 * H:1 * H]
        f_g = sig[:, 1 * H:2 * H]
        g_g = 2.0 * sig[:, 2 * H:3 * H] - 1.0               # == tanh(preact_g)
        o_g = sig[:, 3 * H:4 * H]
        c_new = f_g * c + i_g * g_g
        h_new = o_g * jnp.tanh(c_new)
        return h_new, c_new

    # 2) (layer, time) wavefront.  At step s, layer l handles timestep t = s-l.
    #    Every matmul in a step reads only previous-step state (snapshot), so
    #    the L active matmuls are independent and pipeline on the MXU.
    for s in range(T + L - 1):
        h_in = list(h_state)                                # prev-step snapshot
        for l in range(L):
            t = s - l
            if t < 0 or t >= T:
                continue
            if l == 0:
                g = (gx_ref[t * B:(t + 1) * B, :]
                     + jnp.dot(h_in[0].astype(jnp.bfloat16), whh0_ref[...],
                               preferred_element_type=jnp.float32))
            else:
                # Fused input+recurrent projection for layers >= 1:
                # [h_{l-1,t} ; h_{l,t-1}] @ [W_ih^T ; W_hh^T] -> one MXU push.
                inp = jnp.concatenate([h_in[l - 1].astype(jnp.bfloat16),
                                       h_in[l].astype(jnp.bfloat16)],
                                      axis=-1)              # (B, 2H) bf16
                g = (jnp.dot(inp, wstk_ref[l - 1],
                             preferred_element_type=jnp.float32)
                     + brest[l - 1:l, :])
            h_new, c_new = lstm_cell(g, c_state[l])
            h_state[l] = h_new
            c_state[l] = c_new
            if l == L - 1:
                hout_ref[t * B:(t + 1) * B, :] = h_new      # stage for FC head

    # TODO(synk): nn.LSTM inter-layer dropout / self.dropout are train-time
    # only; this is inference-semantics forward, so dropout is a no-op.

    # 3) FC head fused into the same kernel, lane-dense padded weights ->
    #    unmasked (T*B, 128) store.  Caller slices the valid O columns.
    out = (jnp.dot(hout_ref[...].astype(jnp.bfloat16), fcw_ref[...],
                   preferred_element_type=jnp.float32)
           + fcb_ref[...])
    out_ref[...] = out


def wesad_lstm_forward(params, x, h):
    """x: (T, B, input_dim); h = (h0, c0) each (L, B, H). Returns (T, B, out)."""
    h0_all, c0_all = h
    T, B, F = x.shape
    L, _, H = h0_all.shape
    assert F == H, "WesadLSTM requires hidden_size == input_dim (module spec)"
    O = params["fc_w"].shape[0]
    O_PAD = 128
    assert O <= O_PAD

    # g-gate (cell-candidate) columns pre-scaled by 2: lets the kernel use
    # tanh(z) = 2*sigmoid(2z) - 1 with a single sigmoid over the gate vreg.
    g_scale = jnp.concatenate([jnp.ones((2 * H,), jnp.float32),
                               jnp.full((H,), 2.0, jnp.float32),
                               jnp.ones((H,), jnp.float32)])          # (4H,)

    # Layer 0: separate W_ih / W_hh (input projection is hoisted over time).
    w_ih0, w_hh0, b_ih0, b_hh0 = params["lstm"][0]
    wih0_t = (w_ih0.T * g_scale).astype(jnp.bfloat16)                 # (F, 4H)
    whh0_t = (w_hh0.T * g_scale).astype(jnp.bfloat16)                 # (H, 4H)
    b0 = ((b_ih0 + b_hh0) * g_scale).reshape(1, 4 * H)                # (1, 4H)

    # Layers 1..L-1: stacked [W_ih^T ; W_hh^T] for the fused per-step matmul.
    wstk_list, brest_list = [], []
    for l in range(1, L):
        w_ih, w_hh, b_ih, b_hh = params["lstm"][l]
        wstk_list.append(jnp.concatenate([w_ih.T, w_hh.T], axis=0) * g_scale)
        brest_list.append((b_ih + b_hh) * g_scale)
    if L > 1:
        wstk = jnp.stack(wstk_list).astype(jnp.bfloat16)   # (L-1, 2H, 4H)
        brest = jnp.stack(brest_list)                      # (L-1, 4H)
    else:  # dummy (never read inside the kernel when L == 1)
        wstk = jnp.zeros((1, 2 * H, 4 * H), jnp.bfloat16)
        brest = jnp.zeros((1, 4 * H), jnp.float32)

    # Lane-dense FC head: pad the (H, O) weight / (O,) bias to 128 lanes.
    fcw_pad = (jnp.zeros((H, O_PAD), jnp.float32)
               .at[:, :O].set(params["fc_w"].T)).astype(jnp.bfloat16)
    fcb_pad = jnp.zeros((1, O_PAD), jnp.float32).at[0, :O].set(params["fc_b"])

    x2d = x.reshape(T * B, F).astype(jnp.bfloat16)

    vmem = pl.BlockSpec(memory_space=pltpu.MemorySpace.VMEM)
    out_pad = pl.pallas_call(
        _wesad_lstm_wavefront_kernel,
        out_shape=jax.ShapeDtypeStruct((T * B, O_PAD), jnp.float32),
        in_specs=[vmem] * 10,
        out_specs=vmem,
        scratch_shapes=[pltpu.VMEM((T * B, 4 * H), jnp.float32),   # gates_x
                        pltpu.VMEM((T * B, H), jnp.float32)],      # last-layer h
    )(x2d, h0_all, c0_all, wih0_t, whh0_t, b0, wstk, brest, fcw_pad, fcb_pad)

    return out_pad[:, :O].reshape(T, B, O)


# ------------------------------ Initialization --------------------------------

def init_params(key, input_dim, hidden_dim, output_dim, lstm_layers):
    """PyTorch-style uniform(-1/sqrt(H), 1/sqrt(H)) init."""
    H = input_dim  # nn.LSTM(hidden_size=input_dim) per the module
    k_lstm = 1.0 / math.sqrt(H)
    k_fc = 1.0 / math.sqrt(hidden_dim)
    params = {"lstm": []}
    for l in range(lstm_layers):
        key, k1, k2, k3, k4 = jax.random.split(key, 5)
        in_f = input_dim if l == 0 else H
        w_ih = jax.random.uniform(k1, (4 * H, in_f), jnp.float32, -k_lstm, k_lstm)
        w_hh = jax.random.uniform(k2, (4 * H, H), jnp.float32, -k_lstm, k_lstm)
        b_ih = jax.random.uniform(k3, (4 * H,), jnp.float32, -k_lstm, k_lstm)
        b_hh = jax.random.uniform(k4, (4 * H,), jnp.float32, -k_lstm, k_lstm)
        params["lstm"].append((w_ih, w_hh, b_ih, b_hh))
    key, k5, k6 = jax.random.split(key, 3)
    params["fc_w"] = jax.random.uniform(k5, (output_dim, hidden_dim),
                                        jnp.float32, -k_fc, k_fc)
    params["fc_b"] = jax.random.uniform(k6, (output_dim,),
                                        jnp.float32, -k_fc, k_fc)
    return params


# --------------------------- Pure-JAX reference --------------------------------

def _ref_forward(params, x, h):
    """Plain jnp/lax.scan reference (nn.LSTM inference semantics, f32)."""
    h0_all, c0_all = h
    H = h0_all.shape[-1]
    y = x
    for l, (w_ih, w_hh, b_ih, b_hh) in enumerate(params["lstm"]):
        def step(carry, x_t, w_ih=w_ih, w_hh=w_hh, b_ih=b_ih, b_hh=b_hh):
            hh, cc = carry
            g = (jnp.dot(x_t, w_ih.T, precision=jax.lax.Precision.HIGHEST)
                 + jnp.dot(hh, w_hh.T, precision=jax.lax.Precision.HIGHEST)
                 + b_ih + b_hh)
            i = jax.nn.sigmoid(g[:, 0 * H:1 * H])
            f = jax.nn.sigmoid(g[:, 1 * H:2 * H])
            gg = jnp.tanh(g[:, 2 * H:3 * H])
            o = jax.nn.sigmoid(g[:, 3 * H:4 * H])
            cc = f * cc + i * gg
            hh = o * jnp.tanh(cc)
            return (hh, cc), hh
        (_, _), y = jax.lax.scan(step, (h0_all[l], c0_all[l]), y)
    T, B, _ = y.shape
    out = (jnp.dot(y.reshape(T * B, H), params["fc_w"].T,
                   precision=jax.lax.Precision.HIGHEST) + params["fc_b"])
    return out.reshape(T, B, -1)


# ----------------------------------- Main --------------------------------------

if __name__ == "__main__":
    INPUT_DIM = 32     # features per timestep (== LSTM hidden_size in the module)
    HIDDEN_DIM = 32    # fc input width; must equal INPUT_DIM (module constraint)
    OUTPUT_DIM = 3
    LSTM_LAYERS = 2
    T, B = 8, 8        # B=8 fills all 8 vreg sublanes

    key = jax.random.PRNGKey(0)
    key, kp, kx = jax.random.split(key, 3)
    params = init_params(kp, INPUT_DIM, HIDDEN_DIM, OUTPUT_DIM, LSTM_LAYERS)

    x = jax.random.normal(kx, (T, B, INPUT_DIM), jnp.float32)
    # init_hidden -> zeros, shape (num_layers, batch, hidden)
    h0 = jnp.zeros((LSTM_LAYERS, B, INPUT_DIM), jnp.float32)
    c0 = jnp.zeros((LSTM_LAYERS, B, INPUT_DIM), jnp.float32)

    out = wesad_lstm_forward(params, x, (h0, c0))
    out = jax.block_until_ready(out)
    assert out.shape == (T, B, OUTPUT_DIM), out.shape
    assert bool(jnp.all(jnp.isfinite(out)))

    ref = jax.block_until_ready(_ref_forward(params, x, (h0, c0)))
    max_err = float(jnp.max(jnp.abs(out - ref)))
    # bf16 MXU operands (f32 accumulation) vs. an f32/HIGHEST reference:
    # tolerance widened accordingly (typical max err is a few 1e-3).
    assert max_err < 3e-2, max_err

    print("KERNEL_OK")
</pallas_src>

<mosaic_0001>
module attributes {stable_mosaic.version = 11 : i64} {
  func.func @_wesad_lstm_wavefront_kernel(%arg0: memref<64x32xbf16, #tpu.memory_space<vmem>>, %arg1: memref<2x8x32xf32, #tpu.memory_space<vmem>>, %arg2: memref<2x8x32xf32, #tpu.memory_space<vmem>>, %arg3: memref<32x128xbf16, #tpu.memory_space<vmem>>, %arg4: memref<32x128xbf16, #tpu.memory_space<vmem>>, %arg5: memref<1x128xf32, #tpu.memory_space<vmem>>, %arg6: memref<1x64x128xbf16, #tpu.memory_space<vmem>>, %arg7: memref<1x128xf32, #tpu.memory_space<vmem>>, %arg8: memref<32x128xbf16, #tpu.memory_space<vmem>>, %arg9: memref<1x128xf32, #tpu.memory_space<vmem>>, %arg10: memref<64x128xf32, #tpu.memory_space<vmem>>, %arg11: memref<64x128xf32, #tpu.memory_space<vmem>>, %arg12: memref<64x32xf32, #tpu.memory_space<vmem>>) attributes {dimension_semantics = [], scalar_prefetch = 0 : i64, scratch_operands = 2 : i64, tpu.core_type = #tpu.core_type<tc>} {
    %c0 = arith.constant 0 : index
    %c0_0 = arith.constant 0 : index
    %0 = vector.load %arg0[%c0, %c0_0] : memref<64x32xbf16, #tpu.memory_space<vmem>>, vector<64x32xbf16>
    %c0_1 = arith.constant 0 : index
    %c0_2 = arith.constant 0 : index
    %1 = vector.load %arg3[%c0_1, %c0_2] : memref<32x128xbf16, #tpu.memory_space<vmem>>, vector<32x128xbf16>
    %cst = arith.constant dense<0.000000e+00> : vector<64x128xf32>
    %2 = tpu.matmul %0, %1, %cst {dimension_numbers = #tpu.dot_dimension_numbers<[1], [0], [0], [1], [0, 0, 1, 1], [], []>} : vector<64x32xbf16>, vector<32x128xbf16>, vector<64x128xf32> -> vector<64x128xf32>
    %c0_3 = arith.constant 0 : index
    %c0_4 = arith.constant 0 : index
    %3 = vector.load %arg5[%c0_3, %c0_4] : memref<1x128xf32, #tpu.memory_space<vmem>>, vector<1x128xf32>
    %4 = vector.broadcast %3 : vector<1x128xf32> to vector<64x128xf32>
    %5 = arith.addf %2, %4 : vector<64x128xf32>
    %c0_5 = arith.constant 0 : index
    %c0_6 = arith.constant 0 : index
    %6 = vector.load %arg11[%c0_5, %c0_6] : memref<64x128xf32, #tpu.memory_space<vmem>>, vector<64x128xf32>
    tpu.vector_store %arg11[%c0_5, %c0_6], %5 {strides = array<i32>} : memref<64x128xf32, #tpu.memory_space<vmem>>, vector<64x128xf32>,
    %c0_7 = arith.constant 0 : index
    %c0_8 = arith.constant 0 : index
    %7 = vector.load %arg7[%c0_7, %c0_8] : memref<1x128xf32, #tpu.memory_space<vmem>>, vector<1x128xf32>
    %c0_9 = arith.constant 0 : index
    %c0_10 = arith.constant 0 : index
    %c0_11 = arith.constant 0 : index
    %8 = vector.load %arg1[%c0_9, %c0_10, %c0_11] : memref<2x8x32xf32, #tpu.memory_space<vmem>>, vector<1x8x32xf32>
    %9 = vector.shape_cast %8 : vector<1x8x32xf32> to vector<8x32xf32>
    %c1 = arith.constant 1 : index
    %c0_12 = arith.constant 0 : index
    %c0_13 = arith.constant 0 : index
    %10 = vector.load %arg1[%c1, %c0_12, %c0_13] : memref<2x8x32xf32, #tpu.memory_space<vmem>>, vector<1x8x32xf32>
    %11 = vector.shape_cast %10 : vector<1x8x32xf32> to vector<8x32xf32>
    %c0_14 = arith.constant 0 : index
    %c0_15 = arith.constant 0 : index
    %c0_16 = arith.constant 0 : index
    %12 = vector.load %arg2[%c0_14, %c0_15, %c0_16] : memref<2x8x32xf32, #tpu.memory_space<vmem>>, vector<1x8x32xf32>
    %13 = vector.shape_cast %12 : vector<1x8x32xf32> to vector<8x32xf32>
    %c1_17 = arith.constant 1 : index
    %c0_18 = arith.constant 0 : index
    %c0_19 = arith.constant 0 : index
    %14 = vector.load %arg2[%c1_17, %c0_18, %c0_19] : memref<2x8x32xf32, #tpu.memory_space<vmem>>, vector<1x8x32xf32>
    %15 = vector.shape_cast %14 : vector<1x8x32xf32> to vector<8x32xf32>
    %c0_20 = arith.constant 0 : index
    %c0_21 = arith.constant 0 : index
    %16 = vector.load %arg11[%c0_20, %c0_21] : memref<64x128xf32, #tpu.memory_space<vmem>>, vector<8x128xf32>
    %17 = arith.truncf %9 : vector<8x32xf32> to vector<8x32xbf16>
    %c0_22 = arith.constant 0 : index
    %c0_23 = arith.constant 0 : index
    %18 = vector.load %arg4[%c0_22, %c0_23] : memref<32x128xbf16, #tpu.memory_space<vmem>>, vector<32x128xbf16>
    %cst_24 = arith.constant dense<0.000000e+00> : vector<8x128xf32>
    %19 = tpu.matmul %17, %18, %cst_24 {dimension_numbers = #tpu.dot_dimension_numbers<[1], [0], [0], [1], [0, 0, 1, 1], [], []>} : vector<8x32xbf16>, vector<32x128xbf16>, vector<8x128xf32> -> vector<8x128xf32>
    %20 = arith.addf %16, %19 : vector<8x128xf32>
    %21 = arith.negf %20 : vector<8x128xf32>
    %22 = math.exp %21 : vector<8x128xf32>
    %cst_25 = arith.constant 1.000000e+00 : f32
    %23 = vector.broadcast %cst_25 : f32 to vector<8x128xf32>
    %24 = arith.addf %23, %22 : vector<8x128xf32>
    %25 = arith.divf %23, %24 : vector<8x128xf32>
    %26 = vector.extract_strided_slice %25 {offsets = [0, 0], sizes = [8, 32], strides = [1, 1]} : vector<8x128xf32> to vector<8x32xf32>
    %27 = vector.extract_strided_slice %25 {offsets = [0, 32], sizes = [8, 32], strides = [1, 1]} : vector<8x128xf32> to vector<8x32xf32>
    %28 = vector.extract_strided_slice %25 {offsets = [0, 64], sizes = [8, 32], strides = [1, 1]} : vector<8x128xf32> to vector<8x32xf32>
    %cst_26 = arith.constant 2.000000e+00 : f32
    %29 = vector.broadcast %cst_26 : f32 to vector<8x32xf32>
    %30 = arith.mulf %29, %28 : vector<8x32xf32>
    %cst_27 = arith.constant 1.000000e+00 : f32
    %31 = vector.broadcast %cst_27 : f32 to vector<8x32xf32>
    %32 = arith.subf %30, %31 : vector<8x32xf32>
    %33 = vector.extract_strided_slice %25 {offsets = [0, 96], sizes = [8, 32], strides = [1, 1]} : vector<8x128xf32> to vector<8x32xf32>
    %34 = arith.mulf %27, %13 : vector<8x32xf32>
    %35 = arith.mulf %26, %32 : vector<8x32xf32>
    %36 = arith.addf %34, %35 : vector<8x32xf32>
    %37 = math.tanh %36 : vector<8x32xf32>
    %38 = arith.mulf %33, %37 : vector<8x32xf32>
    %c8 = arith.constant 8 : index
    %c0_28 = arith.constant 0 : index
    %39 = vector.load %arg11[%c8, %c0_28] : memref<64x128xf32, #tpu.memory_space<vmem>>, vector<8x128xf32>
    %40 = arith.truncf %38 : vector<8x32xf32> to vector<8x32xbf16>
    %c0_29 = arith.constant 0 : index
    %c0_30 = arith.constant 0 : index
    %41 = vector.load %arg4[%c0_29, %c0_30] : memref<32x128xbf16, #tpu.memory_space<vmem>>, vector<32x128xbf16>
    %cst_31 = arith.constant dense<0.000000e+00> : vector<8x128xf32>
    %42 = tpu.matmul %40, %41, %cst_31 {dimension_numbers = #tpu.dot_dimension_numbers<[1], [0], [0], [1], [0, 0, 1, 1], [], []>} : vector<8x32xbf16>, vector<32x128xbf16>, vector<8x128xf32> -> vector<8x128xf32>
    %43 = arith.addf %39, %42 : vector<8x128xf32>
    %44 = arith.negf %43 : vector<8x128xf32>
    %45 = math.exp %44 : vector<8x128xf32>
    %cst_32 = arith.constant 1.000000e+00 : f32
    %46 = vector.broadcast %cst_32 : f32 to vector<8x128xf32>
    %47 = arith.addf %46, %45 : vector<8x128xf32>
    %48 = arith.divf %46, %47 : vector<8x128xf32>
    %49 = vector.extract_strided_slice %48 {offsets = [0, 0], sizes = [8, 32], strides = [1, 1]} : vector<8x128xf32> to vector<8x32xf32>
    %50 = vector.extract_strided_slice %48 {offsets = [0, 32], sizes = [8, 32], strides = [1, 1]} : vector<8x128xf32> to vector<8x32xf32>
    %51 = vector.extract_strided_slice %48 {offsets = [0, 64], sizes = [8, 32], strides = [1, 1]} : vector<8x128xf32> to vector<8x32xf32>
    %cst_33 = arith.constant 2.000000e+00 : f32
    %52 = vector.broadcast %cst_33 : f32 to vector<8x32xf32>
    %53 = arith.mulf %52, %51 : vector<8x32xf32>
    %cst_34 = arith.constant 1.000000e+00 : f32
    %54 = vector.broadcast %cst_34 : f32 to vector<8x32xf32>
    %55 = arith.subf %53, %54 : vector<8x32xf32>
    %56 = vector.extract_strided_slice %48 {offsets = [0, 96], sizes = [8, 32], strides = [1, 1]} : vector<8x128xf32> to vector<8x32xf32>
    %57 = arith.mulf %50, %36 : vector<8x32xf32>
    %58 = arith.mulf %49, %55 : vector<8x32xf32>
    %59 = arith.addf %57, %58 : vector<8x32xf32>
    %60 = math.tanh %59 : vector<8x32xf32>
    %61 = arith.mulf %56, %60 : vector<8x32xf32>
    %62 = arith.truncf %38 : vector<8x32xf32> to vector<8x32xbf16>
    %63 = arith.truncf %11 : vector<8x32xf32> to vector<8x32xbf16>
    %64 = tpu.concatenate %62, %63 in 1 : vector<8x32xbf16>, vector<8x32xbf16> -> vector<8x64xbf16>
    %c0_35 = arith.constant 0 : index
    %c0_36 = arith.constant 0 : index
    %c0_37 = arith.constant 0 : index
    %65 = vector.load %arg6[%c0_35, %c0_36, %c0_37] : memref<1x64x128xbf16, #tpu.memory_space<vmem>>, vector<1x64x128xbf16>
    %66 = vector.shape_cast %65 : vector<1x64x128xbf16> to vector<64x128xbf16>
    %cst_38 = arith.constant dense<0.000000e+00> : vector<8x128xf32>
    %67 = tpu.matmul %64, %66, %cst_38 {dimension_numbers = #tpu.dot_dimension_numbers<[1], [0], [0], [1], [0, 0, 1, 1], [], []>} : vector<8x64xbf16>, vector<64x128xbf16>, vector<8x128xf32> -> vector<8x128xf32>
    %68 = vector.broadcast %7 : vector<1x128xf32> to vector<8x128xf32>
    %69 = arith.addf %67, %68 : vector<8x128xf32>
    %70 = arith.negf %69 : vector<8x128xf32>
    %71 = math.exp %70 : vector<8x128xf32>
    %cst_39 = arith.constant 1.000000e+00 : f32
    %72 = vector.broadcast %cst_39 : f32 to vector<8x128xf32>
    %73 = arith.addf %72, %71 : vector<8x128xf32>
    %74 = arith.divf %72, %73 : vector<8x128xf32>
    %75 = vector.extract_strided_slice %74 {offsets = [0, 0], sizes = [8, 32], strides = [1, 1]} : vector<8x128xf32> to vector<8x32xf32>
    %76 = vector.extract_strided_slice %74 {offsets = [0, 32], sizes = [8, 32], strides = [1, 1]} : vector<8x128xf32> to vector<8x32xf32>
    %77 = vector.extract_strided_slice %74 {offsets = [0, 64], sizes = [8, 32], strides = [1, 1]} : vector<8x128xf32> to vector<8x32xf32>
    %cst_40 = arith.constant 2.000000e+00 : f32
    %78 = vector.broadcast %cst_40 : f32 to vector<8x32xf32>
    %79 = arith.mulf %78, %77 : vector<8x32xf32>
    %cst_41 = arith.constant 1.000000e+00 : f32
    %80 = vector.broadcast %cst_41 : f32 to vector<8x32xf32>
    %81 = arith.subf %79, %80 : vector<8x32xf32>
    %82 = vector.extract_strided_slice %74 {offsets = [0, 96], sizes = [8, 32], strides = [1, 1]} : vector<8x128xf32> to vector<8x32xf32>
    %83 = arith.mulf %76, %15 : vector<8x32xf32>
    %84 = arith.mulf %75, %81 : vector<8x32xf32>
    %85 = arith.addf %83, %84 : vector<8x32xf32>
    %86 = math.tanh %85 : vector<8x32xf32>
    %87 = arith.mulf %82, %86 : vector<8x32xf32>
    %c0_42 = arith.constant 0 : index
    %c0_43 = arith.constant 0 : index
    %88 = vector.load %arg12[%c0_42, %c0_43] : memref<64x32xf32, #tpu.memory_space<vmem>>, vector<8x32xf32>
    tpu.vector_store %arg12[%c0_42, %c0_43], %87 {strides = array<i32>} : memref<64x32xf32, #tpu.memory_space<vmem>>, vector<8x32xf32>,
    %c16 = arith.constant 16 : index
    %c0_44 = arith.constant 0 : index
    %89 = vector.load %arg11[%c16, %c0_44] : memref<64x128xf32, #tpu.memory_space<vmem>>, vector<8x128xf32>
    %90 = arith.truncf %61 : vector<8x32xf32> to vector<8x32xbf16>
    %c0_45 = arith.constant 0 : index
    %c0_46 = arith.constant 0 : index
    %91 = vector.load %arg4[%c0_45, %c0_46] : memref<32x128xbf16, #tpu.memory_space<vmem>>, vector<32x128xbf16>
    %cst_47 = arith.constant dense<0.000000e+00> : vector<8x128xf32>
    %92 = tpu.matmul %90, %91, %cst_47 {dimension_numbers = #tpu.dot_dimension_numbers<[1], [0], [0], [1], [0, 0, 1, 1], [], []>} : vector<8x32xbf16>, vector<32x128xbf16>, vector<8x128xf32> -> vector<8x128xf32>
    %93 = arith.addf %89, %92 : vector<8x128xf32>
    %94 = arith.negf %93 : vector<8x128xf32>
    %95 = math.exp %94 : vector<8x128xf32>
    %cst_48 = arith.constant 1.000000e+00 : f32
    %96 = vector.broadcast %cst_48 : f32 to vector<8x128xf32>
    %97 = arith.addf %96, %95 : vector<8x128xf32>
    %98 = arith.divf %96, %97 : vector<8x128xf32>
    %99 = vector.extract_strided_slice %98 {offsets = [0, 0], sizes = [8, 32], strides = [1, 1]} : vector<8x128xf32> to vector<8x32xf32>
    %100 = vector.extract_strided_slice %98 {offsets = [0, 32], sizes = [8, 32], strides = [1, 1]} : vector<8x128xf32> to vector<8x32xf32>
    %101 = vector.extract_strided_slice %98 {offsets = [0, 64], sizes = [8, 32], strides = [1, 1]} : vector<8x128xf32> to vector<8x32xf32>
    %cst_49 = arith.constant 2.000000e+00 : f32
    %102 = vector.broadcast %cst_49 : f32 to vector<8x32xf32>
    %103 = arith.mulf %102, %101 : vector<8x32xf32>
    %cst_50 = arith.constant 1.000000e+00 : f32
    %104 = vector.broadcast %cst_50 : f32 to vector<8x32xf32>
    %105 = arith.subf %103, %104 : vector<8x32xf32>
    %106 = vector.extract_strided_slice %98 {offsets = [0, 96], sizes = [8, 32], strides = [1, 1]} : vector<8x128xf32> to vector<8x32xf32>
    %107 = arith.mulf %100, %59 : vector<8x32xf32>
    %108 = arith.mulf %99, %105 : vector<8x32xf32>
    %109 = arith.addf %107, %108 : vector<8x32xf32>
    %110 = math.tanh %109 : vector<8x32xf32>
    %111 = arith.mulf %106, %110 : vector<8x32xf32>
    %112 = arith.truncf %61 : vector<8x32xf32> to vector<8x32xbf16>
    %113 = arith.truncf %87 : vector<8x32xf32> to vector<8x32xbf16>
    %114 = tpu.concatenate %112, %113 in 1 : vector<8x32xbf16>, vector<8x32xbf16> -> vector<8x64xbf16>
    %c0_51 = arith.constant 0 : index
    %c0_52 = arith.constant 0 : index
    %c0_53 = arith.constant 0 : index
    %115 = vector.load %arg6[%c0_51, %c0_52, %c0_53] : memref<1x64x128xbf16, #tpu.memory_space<vmem>>, vector<1x64x128xbf16>
    %116 = vector.shape_cast %115 : vector<1x64x128xbf16> to vector<64x128xbf16>
    %cst_54 = arith.constant dense<0.000000e+00> : vector<8x128xf32>
    %117 = tpu.matmul %114, %116, %cst_54 {dimension_numbers = #tpu.dot_dimension_numbers<[1], [0], [0], [1], [0, 0, 1, 1], [], []>} : vector<8x64xbf16>, vector<64x128xbf16>, vector<8x128xf32> -> vector<8x128xf32>
    %118 = vector.broadcast %7 : vector<1x128xf32> to vector<8x128xf32>
    %119 = arith.addf %117, %118 : vector<8x128xf32>
    %120 = arith.negf %119 : vector<8x128xf32>
    %121 = math.exp %120 : vector<8x128xf32>
    %cst_55 = arith.constant 1.000000e+00 : f32
    %122 = vector.broadcast %cst_55 : f32 to vector<8x128xf32>
    %123 = arith.addf %122, %121 : vector<8x128xf32>
    %124 = arith.divf %122, %123 : vector<8x128xf32>
    %125 = vector.extract_strided_slice %124 {offsets = [0, 0], sizes = [8, 32], strides = [1, 1]} : vector<8x128xf32> to vector<8x32xf32>
    %126 = vector.extract_strided_slice %124 {offsets = [0, 32], sizes = [8, 32], strides = [1, 1]} : vector<8x128xf32> to vector<8x32xf32>
    %127 = vector.extract_strided_slice %124 {offsets = [0, 64], sizes = [8, 32], strides = [1, 1]} : vector<8x128xf32> to vector<8x32xf32>
    %cst_56 = arith.constant 2.000000e+00 : f32
    %128 = vector.broadcast %cst_56 : f32 to vector<8x32xf32>
    %129 = arith.mulf %128, %127 : vector<8x32xf32>
    %cst_57 = arith.constant 1.000000e+00 : f32
    %130 = vector.broadcast %cst_57 : f32 to vector<8x32xf32>
    %131 = arith.subf %129, %130 : vector<8x32xf32>
    %132 = vector.extract_strided_slice %124 {offsets = [0, 96], sizes = [8, 32], strides = [1, 1]} : vector<8x128xf32> to vector<8x32xf32>
    %133 = arith.mulf %126, %85 : vector<8x32xf32>
    %134 = arith.mulf %125, %131 : vector<8x32xf32>
    %135 = arith.addf %133, %134 : vector<8x32xf32>
    %136 = math.tanh %135 : vector<8x32xf32>
    %137 = arith.mulf %132, %136 : vector<8x32xf32>
    %c8_58 = arith.constant 8 : index
    %c0_59 = arith.constant 0 : index
    %138 = vector.load %arg12[%c8_58, %c0_59] : memref<64x32xf32, #tpu.memory_space<vmem>>, vector<8x32xf32>
    tpu.vector_store %arg12[%c8_58, %c0_59], %137 {strides = array<i32>} : memref<64x32xf32, #tpu.memory_space<vmem>>, vector<8x32xf32>,
    %c24 = arith.constant 24 : index
    %c0_60 = arith.constant 0 : index
    %139 = vector.load %arg11[%c24, %c0_60] : memref<64x128xf32, #tpu.memory_space<vmem>>, vector<8x128xf32>
    %140 = arith.truncf %111 : vector<8x32xf32> to vector<8x32xbf16>
    %c0_61 = arith.constant 0 : index
    %c0_62 = arith.constant 0 : index
    %141 = vector.load %arg4[%c0_61, %c0_62] : memref<32x128xbf16, #tpu.memory_space<vmem>>, vector<32x128xbf16>
    %cst_63 = arith.constant dense<0.000000e+00> : vector<8x128xf32>
    %142 = tpu.matmul %140, %141, %cst_63 {dimension_numbers = #tpu.dot_dimension_numbers<[1], [0], [0], [1], [0, 0, 1, 1], [], []>} : vector<8x32xbf16>, vector<32x128xbf16>, vector<8x128xf32> -> vector<8x128xf32>
    %143 = arith.addf %139, %142 : vector<8x128xf32>
    %144 = arith.negf %143 : vector<8x128xf32>
    %145 = math.exp %144 : vector<8x128xf32>
    %cst_64 = arith.constant 1.000000e+00 : f32
    %146 = vector.broadcast %cst_64 : f32 to vector<8x128xf32>
    %147 = arith.addf %146, %145 : vector<8x128xf32>
    %148 = arith.divf %146, %147 : vector<8x128xf32>
    %149 = vector.extract_strided_slice %148 {offsets = [0, 0], sizes = [8, 32], strides = [1, 1]} : vector<8x128xf32> to vector<8x32xf32>
    %150 = vector.extract_strided_slice %148 {offsets = [0, 32], sizes = [8, 32], strides = [1, 1]} : vector<8x128xf32> to vector<8x32xf32>
    %151 = vector.extract_strided_slice %148 {offsets = [0, 64], sizes = [8, 32], strides = [1, 1]} : vector<8x128xf32> to vector<8x32xf32>
    %cst_65 = arith.constant 2.000000e+00 : f32
    %152 = vector.broadcast %cst_65 : f32 to vector<8x32xf32>
    %153 = arith.mulf %152, %151 : vector<8x32xf32>
    %cst_66 = arith.constant 1.000000e+00 : f32
    %154 = vector.broadcast %cst_66 : f32 to vector<8x32xf32>
    %155 = arith.subf %153, %154 : vector<8x32xf32>
    %156 = vector.extract_strided_slice %148 {offsets = [0, 96], sizes = [8, 32], strides = [1, 1]} : vector<8x128xf32> to vector<8x32xf32>
    %157 = arith.mulf %150, %109 : vector<8x32xf32>
    %158 = arith.mulf %149, %155 : vector<8x32xf32>
    %159 = arith.addf %157, %158 : vector<8x32xf32>
    %160 = math.tanh %159 : vector<8x32xf32>
    %161 = arith.mulf %156, %160 : vector<8x32xf32>
    %162 = arith.truncf %111 : vector<8x32xf32> to vector<8x32xbf16>
    %163 = arith.truncf %137 : vector<8x32xf32> to vector<8x32xbf16>
    %164 = tpu.concatenate %162, %163 in 1 : vector<8x32xbf16>, vector<8x32xbf16> -> vector<8x64xbf16>
    %c0_67 = arith.constant 0 : index
    %c0_68 = arith.constant 0 : index
    %c0_69 = arith.constant 0 : index
    %165 = vector.load %arg6[%c0_67, %c0_68, %c0_69] : memref<1x64x128xbf16, #tpu.memory_space<vmem>>, vector<1x64x128xbf16>
    %166 = vector.shape_cast %165 : vector<1x64x128xbf16> to vector<64x128xbf16>
    %cst_70 = arith.constant dense<0.000000e+00> : vector<8x128xf32>
    %167 = tpu.matmul %164, %166, %cst_70 {dimension_numbers = #tpu.dot_dimension_numbers<[1], [0], [0], [1], [0, 0, 1, 1], [], []>} : vector<8x64xbf16>, vector<64x128xbf16>, vector<8x128xf32> -> vector<8x128xf32>
    %168 = vector.broadcast %7 : vector<1x128xf32> to vector<8x128xf32>
    %169 = arith.addf %167, %168 : vector<8x128xf32>
    %170 = arith.negf %169 : vector<8x128xf32>
    %171 = math.exp %170 : vector<8x128xf32>
    %cst_71 = arith.constant 1.000000e+00 : f32
    %172 = vector.broadcast %cst_71 : f32 to vector<8x128xf32>
    %173 = arith.addf %172, %171 : vector<8x128xf32>
    %174 = arith.divf %172, %173 : vector<8x128xf32>
    %175 = vector.extract_strided_slice %174 {offsets = [0, 0], sizes = [8, 32], strides = [1, 1]} : vector<8x128xf32> to vector<8x32xf32>
    %176 = vector.extract_strided_slice %174 {offsets = [0, 32], sizes = [8, 32], strides = [1, 1]} : vector<8x128xf32> to vector<8x32xf32>
    %177 = vector.extract_strided_slice %174 {offsets = [0, 64], sizes = [8, 32], strides = [1, 1]} : vector<8x128xf32> to vector<8x32xf32>
    %cst_72 = arith.constant 2.000000e+00 : f32
    %178 = vector.broadcast %cst_72 : f32 to vector<8x32xf32>
    %179 = arith.mulf %178, %177 : vector<8x32xf32>
    %cst_73 = arith.constant 1.000000e+00 : f32
    %180 = vector.broadcast %cst_73 : f32 to vector<8x32xf32>
    %181 = arith.subf %179, %180 : vector<8x32xf32>
    %182 = vector.extract_strided_slice %174 {offsets = [0, 96], sizes = [8, 32], strides = [1, 1]} : vector<8x128xf32> to vector<8x32xf32>
    %183 = arith.mulf %176, %135 : vector<8x32xf32>
    %184 = arith.mulf %175, %181 : vector<8x32xf32>
    %185 = arith.addf %183, %184 : vector<8x32xf32>
    %186 = math.tanh %185 : vector<8x32xf32>
    %187 = arith.mulf %182, %186 : vector<8x32xf32>
    %c16_74 = arith.constant 16 : index
    %c0_75 = arith.constant 0 : index
    %188 = vector.load %arg12[%c16_74, %c0_75] : memref<64x32xf32, #tpu.memory_space<vmem>>, vector<8x32xf32>
    tpu.vector_store %arg12[%c16_74, %c0_75], %187 {strides = array<i32>} : memref<64x32xf32, #tpu.memory_space<vmem>>, vector<8x32xf32>,
    %c32 = arith.constant 32 : index
    %c0_76 = arith.constant 0 : index
    %189 = vector.load %arg11[%c32, %c0_76] : memref<64x128xf32, #tpu.memory_space<vmem>>, vector<8x128xf32>
    %190 = arith.truncf %161 : vector<8x32xf32> to vector<8x32xbf16>
    %c0_77 = arith.constant 0 : index
    %c0_78 = arith.constant 0 : index
    %191 = vector.load %arg4[%c0_77, %c0_78] : memref<32x128xbf16, #tpu.memory_space<vmem>>, vector<32x128xbf16>
    %cst_79 = arith.constant dense<0.000000e+00> : vector<8x128xf32>
    %192 = tpu.matmul %190, %191, %cst_79 {dimension_numbers = #tpu.dot_dimension_numbers<[1], [0], [0], [1], [0, 0, 1, 1], [], []>} : vector<8x32xbf16>, vector<32x128xbf16>, vector<8x128xf32> -> vector<8x128xf32>
    %193 = arith.addf %189, %192 : vector<8x128xf32>
    %194 = arith.negf %193 : vector<8x128xf32>
    %195 = math.exp %194 : vector<8x128xf32>
    %cst_80 = arith.constant 1.000000e+00 : f32
    %196 = vector.broadcast %cst_80 : f32 to vector<8x128xf32>
    %197 = arith.addf %196, %195 : vector<8x128xf32>
    %198 = arith.divf %196, %197 : vector<8x128xf32>
    %199 = vector.extract_strided_slice %198 {offsets = [0, 0], sizes = [8, 32], strides = [1, 1]} : vector<8x128xf32> to vector<8x32xf32>
    %200 = vector.extract_strided_slice %198 {offsets = [0, 32], sizes = [8, 32], strides = [1, 1]} : vector<8x128xf32> to vector<8x32xf32>
    %201 = vector.extract_strided_slice %198 {offsets = [0, 64], sizes = [8, 32], strides = [1, 1]} : vector<8x128xf32> to vector<8x32xf32>
    %cst_81 = arith.constant 2.000000e+00 : f32
    %202 = vector.broadcast %cst_81 : f32 to vector<8x32xf32>
    %203 = arith.mulf %202, %201 : vector<8x32xf32>
    %cst_82 = arith.constant 1.000000e+00 : f32
    %204 = vector.broadcast %cst_82 : f32 to vector<8x32xf32>
    %205 = arith.subf %203, %204 : vector<8x32xf32>
    %206 = vector.extract_strided_slice %198 {offsets = [0, 96], sizes = [8, 32], strides = [1, 1]} : vector<8x128xf32> to vector<8x32xf32>
    %207 = arith.mulf %200, %159 : vector<8x32xf32>
    %208 = arith.mulf %199, %205 : vector<8x32xf32>
    %209 = arith.addf %207, %208 : vector<8x32xf32>
    %210 = math.tanh %209 : vector<8x32xf32>
    %211 = arith.mulf %206, %210 : vector<8x32xf32>
    %212 = arith.truncf %161 : vector<8x32xf32> to vector<8x32xbf16>
    %213 = arith.truncf %187 : vector<8x32xf32> to vector<8x32xbf16>
    %214 = tpu.concatenate %212, %213 in 1 : vector<8x32xbf16>, vector<8x32xbf16> -> vector<8x64xbf16>
    %c0_83 = arith.constant 0 : index
    %c0_84 = arith.constant 0 : index
    %c0_85 = arith.constant 0 : index
    %215 = vector.load %arg6[%c0_83, %c0_84, %c0_85] : memref<1x64x128xbf16, #tpu.memory_space<vmem>>, vector<1x64x128xbf16>
    %216 = vector.shape_cast %215 : vector<1x64x128xbf16> to vector<64x128xbf16>
    %cst_86 = arith.constant dense<0.000000e+00> : vector<8x128xf32>
    %217 = tpu.matmul %214, %216, %cst_86 {dimension_numbers = #tpu.dot_dimension_numbers<[1], [0], [0], [1], [0, 0, 1, 1], [], []>} : vector<8x64xbf16>, vector<64x128xbf16>, vector<8x128xf32> -> vector<8x128xf32>
    %218 = vector.broadcast %7 : vector<1x128xf32> to vector<8x128xf32>
    %219 = arith.addf %217, %218 : vector<8x128xf32>
    %220 = arith.negf %219 : vector<8x128xf32>
    %221 = math.exp %220 : vector<8x128xf32>
    %cst_87 = arith.constant 1.000000e+00 : f32
    %222 = vector.broadcast %cst_87 : f32 to vector<8x128xf32>
    %223 = arith.addf %222, %221 : vector<8x128xf32>
    %224 = arith.divf %222, %223 : vector<8x128xf32>
    %225 = vector.extract_strided_slice %224 {offsets = [0, 0], sizes = [8, 32], strides = [1, 1]} : vector<8x128xf32> to vector<8x32xf32>
    %226 = vector.extract_strided_slice %224 {offsets = [0, 32], sizes = [8, 32], strides = [1, 1]} : vector<8x128xf32> to vector<8x32xf32>
    %227 = vector.extract_strided_slice %224 {offsets = [0, 64], sizes = [8, 32], strides = [1, 1]} : vector<8x128xf32> to vector<8x32xf32>
    %cst_88 = arith.constant 2.000000e+00 : f32
    %228 = vector.broadcast %cst_88 : f32 to vector<8x32xf32>
    %229 = arith.mulf %228, %227 : vector<8x32xf32>
    %cst_89 = arith.constant 1.000000e+00 : f32
    %230 = vector.broadcast %cst_89 : f32 to vector<8x32xf32>
    %231 = arith.subf %229, %230 : vector<8x32xf32>
    %232 = vector.extract_strided_slice %224 {offsets = [0, 96], sizes = [8, 32], strides = [1, 1]} : vector<8x128xf32> to vector<8x32xf32>
    %233 = arith.mulf %226, %185 : vector<8x32xf32>
    %234 = arith.mulf %225, %231 : vector<8x32xf32>
    %235 = arith.addf %233, %234 : vector<8x32xf32>
    %236 = math.tanh %235 : vector<8x32xf32>
    %237 = arith.mulf %232, %236 : vector<8x32xf32>
    %c24_90 = arith.constant 24 : index
    %c0_91 = arith.constant 0 : index
    %238 = vector.load %arg12[%c24_90, %c0_91] : memref<64x32xf32, #tpu.memory_space<vmem>>, vector<8x32xf32>
    tpu.vector_store %arg12[%c24_90, %c0_91], %237 {strides = array<i32>} : memref<64x32xf32, #tpu.memory_space<vmem>>, vector<8x32xf32>,
    %c40 = arith.constant 40 : index
    %c0_92 = arith.constant 0 : index
    %239 = vector.load %arg11[%c40, %c0_92] : memref<64x128xf32, #tpu.memory_space<vmem>>, vector<8x128xf32>
    %240 = arith.truncf %211 : vector<8x32xf32> to vector<8x32xbf16>
    %c0_93 = arith.constant 0 : index
    %c0_94 = arith.constant 0 : index
    %241 = vector.load %arg4[%c0_93, %c0_94] : memref<32x128xbf16, #tpu.memory_space<vmem>>, vector<32x128xbf16>
    %cst_95 = arith.constant dense<0.000000e+00> : vector<8x128xf32>
    %242 = tpu.matmul %240, %241, %cst_95 {dimension_numbers = #tpu.dot_dimension_numbers<[1], [0], [0], [1], [0, 0, 1, 1], [], []>} : vector<8x32xbf16>, vector<32x128xbf16>, vector<8x128xf32> -> vector<8x128xf32>
    %243 = arith.addf %239, %242 : vector<8x128xf32>
    %244 = arith.negf %243 : vector<8x128xf32>
    %245 = math.exp %244 : vector<8x128xf32>
    %cst_96 = arith.constant 1.000000e+00 : f32
    %246 = vector.broadcast %cst_96 : f32 to vector<8x128xf32>
    %247 = arith.addf %246, %245 : vector<8x128xf32>
    %248 = arith.divf %246, %247 : vector<8x128xf32>
    %249 = vector.extract_strided_slice %248 {offsets = [0, 0], sizes = [8, 32], strides = [1, 1]} : vector<8x128xf32> to vector<8x32xf32>
    %250 = vector.extract_strided_slice %248 {offsets = [0, 32], sizes = [8, 32], strides = [1, 1]} : vector<8x128xf32> to vector<8x32xf32>
    %251 = vector.extract_strided_slice %248 {offsets = [0, 64], sizes = [8, 32], strides = [1, 1]} : vector<8x128xf32> to vector<8x32xf32>
    %cst_97 = arith.constant 2.000000e+00 : f32
    %252 = vector.broadcast %cst_97 : f32 to vector<8x32xf32>
    %253 = arith.mulf %252, %251 : vector<8x32xf32>
    %cst_98 = arith.constant 1.000000e+00 : f32
    %254 = vector.broadcast %cst_98 : f32 to vector<8x32xf32>
    %255 = arith.subf %253, %254 : vector<8x32xf32>
    %256 = vector.extract_strided_slice %248 {offsets = [0, 96], sizes = [8, 32], strides = [1, 1]} : vector<8x128xf32> to vector<8x32xf32>
    %257 = arith.mulf %250, %209 : vector<8x32xf32>
    %258 = arith.mulf %249, %255 : vector<8x32xf32>
    %259 = arith.addf %257, %258 : vector<8x32xf32>
    %260 = math.tanh %259 : vector<8x32xf32>
    %261 = arith.mulf %256, %260 : vector<8x32xf32>
    %262 = arith.truncf %211 : vector<8x32xf32> to vector<8x32xbf16>
    %263 = arith.truncf %237 : vector<8x32xf32> to vector<8x32xbf16>
    %264 = tpu.concatenate %262, %263 in 1 : vector<8x32xbf16>, vector<8x32xbf16> -> vector<8x64xbf16>
    %c0_99 = arith.constant 0 : index
    %c0_100 = arith.constant 0 : index
    %c0_101 = arith.constant 0 : index
    %265 = vector.load %arg6[%c0_99, %c0_100, %c0_101] : memref<1x64x128xbf16, #tpu.memory_space<vmem>>, vector<1x64x128xbf16>
    %266 = vector.shape_cast %265 : vector<1x64x128xbf16> to vector<64x128xbf16>
    %cst_102 = arith.constant dense<0.000000e+00> : vector<8x128xf32>
    %267 = tpu.matmul %264, %266, %cst_102 {dimension_numbers = #tpu.dot_dimension_numbers<[1], [0], [0], [1], [0, 0, 1, 1], [], []>} : vector<8x64xbf16>, vector<64x128xbf16>, vector<8x128xf32> -> vector<8x128xf32>
    %268 = vector.broadcast %7 : vector<1x128xf32> to vector<8x128xf32>
    %269 = arith.addf %267, %268 : vector<8x128xf32>
    %270 = arith.negf %269 : vector<8x128xf32>
    %271 = math.exp %270 : vector<8x128xf32>
    %cst_103 = arith.constant 1.000000e+00 : f32
    %272 = vector.broadcast %cst_103 : f32 to vector<8x128xf32>
    %273 = arith.addf %272, %271 : vector<8x128xf32>
    %274 = arith.divf %272, %273 : vector<8x128xf32>
    %275 = vector.extract_strided_slice %274 {offsets = [0, 0], sizes = [8, 32], strides = [1, 1]} : vector<8x128xf32> to vector<8x32xf32>
    %276 = vector.extract_strided_slice %274 {offsets = [0, 32], sizes = [8, 32], strides = [1, 1]} : vector<8x128xf32> to vector<8x32xf32>
    %277 = vector.extract_strided_slice %274 {offsets = [0, 64], sizes = [8, 32], strides = [1, 1]} : vector<8x128xf32> to vector<8x32xf32>
    %cst_104 = arith.constant 2.000000e+00 : f32
    %278 = vector.broadcast %cst_104 : f32 to vector<8x32xf32>
    %279 = arith.mulf %278, %277 : vector<8x32xf32>
    %cst_105 = arith.constant 1.000000e+00 : f32
    %280 = vector.broadcast %cst_105 : f32 to vector<8x32xf32>
    %281 = arith.subf %279, %280 : vector<8x32xf32>
    %282 = vector.extract_strided_slice %274 {offsets = [0, 96], sizes = [8, 32], strides = [1, 1]} : vector<8x128xf32> to vector<8x32xf32>
    %283 = arith.mulf %276, %235 : vector<8x32xf32>
    %284 = arith.mulf %275, %281 : vector<8x32xf32>
    %285 = arith.addf %283, %284 : vector<8x32xf32>
    %286 = math.tanh %285 : vector<8x32xf32>
    %287 = arith.mulf %282, %286 : vector<8x32xf32>
    %c32_106 = arith.constant 32 : index
    %c0_107 = arith.constant 0 : index
    %288 = vector.load %arg12[%c32_106, %c0_107] : memref<64x32xf32, #tpu.memory_space<vmem>>, vector<8x32xf32>
    tpu.vector_store %arg12[%c32_106, %c0_107], %287 {strides = array<i32>} : memref<64x32xf32, #tpu.memory_space<vmem>>, vector<8x32xf32>,
    %c48 = arith.constant 48 : index
    %c0_108 = arith.constant 0 : index
    %289 = vector.load %arg11[%c48, %c0_108] : memref<64x128xf32, #tpu.memory_space<vmem>>, vector<8x128xf32>
    %290 = arith.truncf %261 : vector<8x32xf32> to vector<8x32xbf16>
    %c0_109 = arith.constant 0 : index
    %c0_110 = arith.constant 0 : index
    %291 = vector.load %arg4[%c0_109, %c0_110] : memref<32x128xbf16, #tpu.memory_space<vmem>>, vector<32x128xbf16>
    %cst_111 = arith.constant dense<0.000000e+00> : vector<8x128xf32>
    %292 = tpu.matmul %290, %291, %cst_111 {dimension_numbers = #tpu.dot_dimension_numbers<[1], [0], [0], [1], [0, 0, 1, 1], [], []>} : vector<8x32xbf16>, vector<32x128xbf16>, vector<8x128xf32> -> vector<8x128xf32>
    %293 = arith.addf %289, %292 : vector<8x128xf32>
    %294 = arith.negf %293 : vector<8x128xf32>
    %295 = math.exp %294 : vector<8x128xf32>
    %cst_112 = arith.constant 1.000000e+00 : f32
    %296 = vector.broadcast %cst_112 : f32 to vector<8x128xf32>
    %297 = arith.addf %296, %295 : vector<8x128xf32>
    %298 = arith.divf %296, %297 : vector<8x128xf32>
    %299 = vector.extract_strided_slice %298 {offsets = [0, 0], sizes = [8, 32], strides = [1, 1]} : vector<8x128xf32> to vector<8x32xf32>
    %300 = vector.extract_strided_slice %298 {offsets = [0, 32], sizes = [8, 32], strides = [1, 1]} : vector<8x128xf32> to vector<8x32xf32>
    %301 = vector.extract_strided_slice %298 {offsets = [0, 64], sizes = [8, 32], strides = [1, 1]} : vector<8x128xf32> to vector<8x32xf32>
    %cst_113 = arith.constant 2.000000e+00 : f32
    %302 = vector.broadcast %cst_113 : f32 to vector<8x32xf32>
    %303 = arith.mulf %302, %301 : vector<8x32xf32>
    %cst_114 = arith.constant 1.000000e+00 : f32
    %304 = vector.broadcast %cst_114 : f32 to vector<8x32xf32>
    %305 = arith.subf %303, %304 : vector<8x32xf32>
    %306 = vector.extract_strided_slice %298 {offsets = [0, 96], sizes = [8, 32], strides = [1, 1]} : vector<8x128xf32> to vector<8x32xf32>
    %307 = arith.mulf %300, %259 : vector<8x32xf32>
    %308 = arith.mulf %299, %305 : vector<8x32xf32>
    %309 = arith.addf %307, %308 : vector<8x32xf32>
    %310 = math.tanh %309 : vector<8x32xf32>
    %311 = arith.mulf %306, %310 : vector<8x32xf32>
    %312 = arith.truncf %261 : vector<8x32xf32> to vector<8x32xbf16>
    %313 = arith.truncf %287 : vector<8x32xf32> to vector<8x32xbf16>
    %314 = tpu.concatenate %312, %313 in 1 : vector<8x32xbf16>, vector<8x32xbf16> -> vector<8x64xbf16>
    %c0_115 = arith.constant 0 : index
    %c0_116 = arith.constant 0 : index
    %c0_117 = arith.constant 0 : index
    %315 = vector.load %arg6[%c0_115, %c0_116, %c0_117] : memref<1x64x128xbf16, #tpu.memory_space<vmem>>, vector<1x64x128xbf16>
    %316 = vector.shape_cast %315 : vector<1x64x128xbf16> to vector<64x128xbf16>
    %cst_118 = arith.constant dense<0.000000e+00> : vector<8x128xf32>
    %317 = tpu.matmul %314, %316, %cst_118 {dimension_numbers = #tpu.dot_dimension_numbers<[1], [0], [0], [1], [0, 0, 1, 1], [], []>} : vector<8x64xbf16>, vector<64x128xbf16>, vector<8x128xf32> -> vector<8x128xf32>
    %318 = vector.broadcast %7 : vector<1x128xf32> to vector<8x128xf32>
    %319 = arith.addf %317, %318 : vector<8x128xf32>
    %320 = arith.negf %319 : vector<8x128xf32>
    %321 = math.exp %320 : vector<8x128xf32>
    %cst_119 = arith.constant 1.000000e+00 : f32
    %322 = vector.broadcast %cst_119 : f32 to vector<8x128xf32>
    %323 = arith.addf %322, %321 : vector<8x128xf32>
    %324 = arith.divf %322, %323 : vector<8x128xf32>
    %325 = vector.extract_strided_slice %324 {offsets = [0, 0], sizes = [8, 32], strides = [1, 1]} : vector<8x128xf32> to vector<8x32xf32>
    %326 = vector.extract_strided_slice %324 {offsets = [0, 32], sizes = [8, 32], strides = [1, 1]} : vector<8x128xf32> to vector<8x32xf32>
    %327 = vector.extract_strided_slice %324 {offsets = [0, 64], sizes = [8, 32], strides = [1, 1]} : vector<8x128xf32> to vector<8x32xf32>
    %cst_120 = arith.constant 2.000000e+00 : f32
    %328 = vector.broadcast %cst_120 : f32 to vector<8x32xf32>
    %329 = arith.mulf %328, %327 : vector<8x32xf32>
    %cst_121 = arith.constant 1.000000e+00 : f32
    %330 = vector.broadcast %cst_121 : f32 to vector<8x32xf32>
    %331 = arith.subf %329, %330 : vector<8x32xf32>
    %332 = vector.extract_strided_slice %324 {offsets = [0, 96], sizes = [8, 32], strides = [1, 1]} : vector<8x128xf32> to vector<8x32xf32>
    %333 = arith.mulf %326, %285 : vector<8x32xf32>
    %334 = arith.mulf %325, %331 : vector<8x32xf32>
    %335 = arith.addf %333, %334 : vector<8x32xf32>
    %336 = math.tanh %335 : vector<8x32xf32>
    %337 = arith.mulf %332, %336 : vector<8x32xf32>
    %c40_122 = arith.constant 40 : index
    %c0_123 = arith.constant 0 : index
    %338 = vector.load %arg12[%c40_122, %c0_123] : memref<64x32xf32, #tpu.memory_space<vmem>>, vector<8x32xf32>
    tpu.vector_store %arg12[%c40_122, %c0_123], %337 {strides = array<i32>} : memref<64x32xf32, #tpu.memory_space<vmem>>, vector<8x32xf32>,
    %c56 = arith.constant 56 : index
    %c0_124 = arith.constant 0 : index
    %339 = vector.load %arg11[%c56, %c0_124] : memref<64x128xf32, #tpu.memory_space<vmem>>, vector<8x128xf32>
    %340 = arith.truncf %311 : vector<8x32xf32> to vector<8x32xbf16>
    %c0_125 = arith.constant 0 : index
    %c0_126 = arith.constant 0 : index
    %341 = vector.load %arg4[%c0_125, %c0_126] : memref<32x128xbf16, #tpu.memory_space<vmem>>, vector<32x128xbf16>
    %cst_127 = arith.constant dense<0.000000e+00> : vector<8x128xf32>
    %342 = tpu.matmul %340, %341, %cst_127 {dimension_numbers = #tpu.dot_dimension_numbers<[1], [0], [0], [1], [0, 0, 1, 1], [], []>} : vector<8x32xbf16>, vector<32x128xbf16>, vector<8x128xf32> -> vector<8x128xf32>
    %343 = arith.addf %339, %342 : vector<8x128xf32>
    %344 = arith.negf %343 : vector<8x128xf32>
    %345 = math.exp %344 : vector<8x128xf32>
    %cst_128 = arith.constant 1.000000e+00 : f32
    %346 = vector.broadcast %cst_128 : f32 to vector<8x128xf32>
    %347 = arith.addf %346, %345 : vector<8x128xf32>
    %348 = arith.divf %346, %347 : vector<8x128xf32>
    %349 = vector.extract_strided_slice %348 {offsets = [0, 0], sizes = [8, 32], strides = [1, 1]} : vector<8x128xf32> to vector<8x32xf32>
    %350 = vector.extract_strided_slice %348 {offsets = [0, 32], sizes = [8, 32], strides = [1, 1]} : vector<8x128xf32> to vector<8x32xf32>
    %351 = vector.extract_strided_slice %348 {offsets = [0, 64], sizes = [8, 32], strides = [1, 1]} : vector<8x128xf32> to vector<8x32xf32>
    %cst_129 = arith.constant 2.000000e+00 : f32
    %352 = vector.broadcast %cst_129 : f32 to vector<8x32xf32>
    %353 = arith.mulf %352, %351 : vector<8x32xf32>
    %cst_130 = arith.constant 1.000000e+00 : f32
    %354 = vector.broadcast %cst_130 : f32 to vector<8x32xf32>
    %355 = arith.subf %353, %354 : vector<8x32xf32>
    %356 = vector.extract_strided_slice %348 {offsets = [0, 96], sizes = [8, 32], strides = [1, 1]} : vector<8x128xf32> to vector<8x32xf32>
    %357 = arith.mulf %350, %309 : vector<8x32xf32>
    %358 = arith.mulf %349, %355 : vector<8x32xf32>
    %359 = arith.addf %357, %358 : vector<8x32xf32>
    %360 = math.tanh %359 : vector<8x32xf32>
    %361 = arith.mulf %356, %360 : vector<8x32xf32>
    %362 = arith.truncf %311 : vector<8x32xf32> to vector<8x32xbf16>
    %363 = arith.truncf %337 : vector<8x32xf32> to vector<8x32xbf16>
    %364 = tpu.concatenate %362, %363 in 1 : vector<8x32xbf16>, vector<8x32xbf16> -> vector<8x64xbf16>
    %c0_131 = arith.constant 0 : index
    %c0_132 = arith.constant 0 : index
    %c0_133 = arith.constant 0 : index
    %365 = vector.load %arg6[%c0_131, %c0_132, %c0_133] : memref<1x64x128xbf16, #tpu.memory_space<vmem>>, vector<1x64x128xbf16>
    %366 = vector.shape_cast %365 : vector<1x64x128xbf16> to vector<64x128xbf16>
    %cst_134 = arith.constant dense<0.000000e+00> : vector<8x128xf32>
    %367 = tpu.matmul %364, %366, %cst_134 {dimension_numbers = #tpu.dot_dimension_numbers<[1], [0], [0], [1], [0, 0, 1, 1], [], []>} : vector<8x64xbf16>, vector<64x128xbf16>, vector<8x128xf32> -> vector<8x128xf32>
    %368 = vector.broadcast %7 : vector<1x128xf32> to vector<8x128xf32>
    %369 = arith.addf %367, %368 : vector<8x128xf32>
    %370 = arith.negf %369 : vector<8x128xf32>
    %371 = math.exp %370 : vector<8x128xf32>
    %cst_135 = arith.constant 1.000000e+00 : f32
    %372 = vector.broadcast %cst_135 : f32 to vector<8x128xf32>
    %373 = arith.addf %372, %371 : vector<8x128xf32>
    %374 = arith.divf %372, %373 : vector<8x128xf32>
    %375 = vector.extract_strided_slice %374 {offsets = [0, 0], sizes = [8, 32], strides = [1, 1]} : vector<8x128xf32> to vector<8x32xf32>
    %376 = vector.extract_strided_slice %374 {offsets = [0, 32], sizes = [8, 32], strides = [1, 1]} : vector<8x128xf32> to vector<8x32xf32>
    %377 = vector.extract_strided_slice %374 {offsets = [0, 64], sizes = [8, 32], strides = [1, 1]} : vector<8x128xf32> to vector<8x32xf32>
    %cst_136 = arith.constant 2.000000e+00 : f32
    %378 = vector.broadcast %cst_136 : f32 to vector<8x32xf32>
    %379 = arith.mulf %378, %377 : vector<8x32xf32>
    %cst_137 = arith.constant 1.000000e+00 : f32
    %380 = vector.broadcast %cst_137 : f32 to vector<8x32xf32>
    %381 = arith.subf %379, %380 : vector<8x32xf32>
    %382 = vector.extract_strided_slice %374 {offsets = [0, 96], sizes = [8, 32], strides = [1, 1]} : vector<8x128xf32> to vector<8x32xf32>
    %383 = arith.mulf %376, %335 : vector<8x32xf32>
    %384 = arith.mulf %375, %381 : vector<8x32xf32>
    %385 = arith.addf %383, %384 : vector<8x32xf32>
    %386 = math.tanh %385 : vector<8x32xf32>
    %387 = arith.mulf %382, %386 : vector<8x32xf32>
    %c48_138 = arith.constant 48 : index
    %c0_139 = arith.constant 0 : index
    %388 = vector.load %arg12[%c48_138, %c0_139] : memref<64x32xf32, #tpu.memory_space<vmem>>, vector<8x32xf32>
    tpu.vector_store %arg12[%c48_138, %c0_139], %387 {strides = array<i32>} : memref<64x32xf32, #tpu.memory_space<vmem>>, vector<8x32xf32>,
    %389 = arith.truncf %361 : vector<8x32xf32> to vector<8x32xbf16>
    %390 = arith.truncf %387 : vector<8x32xf32> to vector<8x32xbf16>
    %391 = tpu.concatenate %389, %390 in 1 : vector<8x32xbf16>, vector<8x32xbf16> -> vector<8x64xbf16>
    %c0_140 = arith.constant 0 : index
    %c0_141 = arith.constant 0 : index
    %c0_142 = arith.constant 0 : index
    %392 = vector.load %arg6[%c0_140, %c0_141, %c0_142] : memref<1x64x128xbf16, #tpu.memory_space<vmem>>, vector<1x64x128xbf16>
    %393 = vector.shape_cast %392 : vector<1x64x128xbf16> to vector<64x128xbf16>
    %cst_143 = arith.constant dense<0.000000e+00> : vector<8x128xf32>
    %394 = tpu.matmul %391, %393, %cst_143 {dimension_numbers = #tpu.dot_dimension_numbers<[1], [0], [0], [1], [0, 0, 1, 1], [], []>} : vector<8x64xbf16>, vector<64x128xbf16>, vector<8x128xf32> -> vector<8x128xf32>
    %395 = vector.broadcast %7 : vector<1x128xf32> to vector<8x128xf32>
    %396 = arith.addf %394, %395 : vector<8x128xf32>
    %397 = arith.negf %396 : vector<8x128xf32>
    %398 = math.exp %397 : vector<8x128xf32>
    %cst_144 = arith.constant 1.000000e+00 : f32
    %399 = vector.broadcast %cst_144 : f32 to vector<8x128xf32>
    %400 = arith.addf %399, %398 : vector<8x128xf32>
    %401 = arith.divf %399, %400 : vector<8x128xf32>
    %402 = vector.extract_strided_slice %401 {offsets = [0, 0], sizes = [8, 32], strides = [1, 1]} : vector<8x128xf32> to vector<8x32xf32>
    %403 = vector.extract_strided_slice %401 {offsets = [0, 32], sizes = [8, 32], strides = [1, 1]} : vector<8x128xf32> to vector<8x32xf32>
    %404 = vector.extract_strided_slice %401 {offsets = [0, 64], sizes = [8, 32], strides = [1, 1]} : vector<8x128xf32> to vector<8x32xf32>
    %cst_145 = arith.constant 2.000000e+00 : f32
    %405 = vector.broadcast %cst_145 : f32 to vector<8x32xf32>
    %406 = arith.mulf %405, %404 : vector<8x32xf32>
    %cst_146 = arith.constant 1.000000e+00 : f32
    %407 = vector.broadcast %cst_146 : f32 to vector<8x32xf32>
    %408 = arith.subf %406, %407 : vector<8x32xf32>
    %409 = vector.extract_strided_slice %401 {offsets = [0, 96], sizes = [8, 32], strides = [1, 1]} : vector<8x128xf32> to vector<8x32xf32>
    %410 = arith.mulf %403, %385 : vector<8x32xf32>
    %411 = arith.mulf %402, %408 : vector<8x32xf32>
    %412 = arith.addf %410, %411 : vector<8x32xf32>
    %413 = math.tanh %412 : vector<8x32xf32>
    %414 = arith.mulf %409, %413 : vector<8x32xf32>
    %c56_147 = arith.constant 56 : index
    %c0_148 = arith.constant 0 : index
    %415 = vector.load %arg12[%c56_147, %c0_148] : memref<64x32xf32, #tpu.memory_space<vmem>>, vector<8x32xf32>
    tpu.vector_store %arg12[%c56_147, %c0_148], %414 {strides = array<i32>} : memref<64x32xf32, #tpu.memory_space<vmem>>, vector<8x32xf32>,
    %c0_149 = arith.constant 0 : index
    %c0_150 = arith.constant 0 : index
    %416 = vector.load %arg12[%c0_149, %c0_150] : memref<64x32xf32, #tpu.memory_space<vmem>>, vector<64x32xf32>
    %417 = arith.truncf %416 : vector<64x32xf32> to vector<64x32xbf16>
    %c0_151 = arith.constant 0 : index
    %c0_152 = arith.constant 0 : index
    %418 = vector.load %arg8[%c0_151, %c0_152] : memref<32x128xbf16, #tpu.memory_space<vmem>>, vector<32x128xbf16>
    %cst_153 = arith.constant dense<0.000000e+00> : vector<64x128xf32>
    %419 = tpu.matmul %417, %418, %cst_153 {dimension_numbers = #tpu.dot_dimension_numbers<[1], [0], [0], [1], [0, 0, 1, 1], [], []>} : vector<64x32xbf16>, vector<32x128xbf16>, vector<64x128xf32> -> vector<64x128xf32>
    %c0_154 = arith.constant 0 : index
    %c0_155 = arith.constant 0 : index
    %420 = vector.load %arg9[%c0_154, %c0_155] : memref<1x128xf32, #tpu.memory_space<vmem>>, vector<1x128xf32>
    %421 = vector.broadcast %420 : vector<1x128xf32> to vector<64x128xf32>
    %422 = arith.addf %419, %421 : vector<64x128xf32>
    %c0_156 = arith.constant 0 : index
    %c0_157 = arith.constant 0 : index
    %423 = vector.load %arg10[%c0_156, %c0_157] : memref<64x128xf32, #tpu.memory_space<vmem>>, vector<64x128xf32>
    tpu.vector_store %arg10[%c0_156, %c0_157], %422 {strides = array<i32>} : memref<64x128xf32, #tpu.memory_space<vmem>>, vector<64x128xf32>,
    return
  }
}

</mosaic_0001>

<llo_original>
// kernel: tpu_custom_call.1
$region0: #{tpu_custom_call.1}
  #allocation0 [shape = 'u32[]', space=smem, size = 0x4, offset = 0x4, fixed_abs, tag = 'smem constant byte address 0x4 - core index']
  #allocation1 [shape = 'u32[144,128]{1,0:T(1,128)}', space=vmem, size = 0x12000, scoped, tag = 'internal scratch']
  #allocation2 [shape = 'f32[64,128]{1,0:T(8,128)}', space=vmem, size = 0x8000, scoped, tag = 'scratch operand']
  #allocation3 [shape = 'f32[64,32]{1,0:T(8,128)}', space=vmem, size = 0x8000, scoped, tag = 'scratch operand']
  %s0 = inlined_call_operand.vmem [shape: bf16[64,32], index: 0, kind: input, shape index: {}]
  %s1 = inlined_call_operand.vmem [shape: f32[2,8,32], index: 1, kind: input, shape index: {}]
  %s2 = inlined_call_operand.hbm [shape: f32[2,8,32], index: 2, kind: input, shape index: {}]
  %s3 = inlined_call_operand.hbm [shape: bf16[32,128], index: 3, kind: input, shape index: {}]
  %s4 = inlined_call_operand.hbm [shape: bf16[32,128], index: 4, kind: input, shape index: {}]
  %s5 = inlined_call_operand.vmem [shape: f32[1,128], index: 5, kind: input, shape index: {}]
  %s6 = inlined_call_operand.vmem [shape: bf16[1,64,128], index: 6, kind: input, shape index: {}]
  %s7 = inlined_call_operand.vmem [shape: f32[1,128], index: 7, kind: input, shape index: {}]
  %s8 = inlined_call_operand.hbm [shape: bf16[32,128], index: 8, kind: input, shape index: {}]
  %s9 = inlined_call_operand.vmem [shape: f32[1,128], index: 9, kind: input, shape index: {}]
  %s10 = inlined_call_operand.hbm [shape: f32[64,128], index: 10, kind: output, shape index: {}]
  %s11 = sld [smem:[#allocation0]]
  $region66: #{tpu_custom_call.1} parent=0
    _
  %s13 = ssub.s32 1, %s11
  %s14 = scalar_select 0, %s13, %s11
  $region1: #{tpu_custom_call.1} parent=0
    #allocation4 [shape = 'u8[8192]{0}', space=vmem, size = 0x2000, scoped, tag = 'input window, operand 2, single buffered']
    #allocation5 [shape = 's32[1]{0}', space=sflag, size = 0x4, scoped, tag = 'scoped memory for tpu_custom_call.1']
    #allocation6 [shape = 's32[1]{0}', space=sflag, size = 0x4, scoped, tag = 'scoped memory for tpu_custom_call.1']
    #allocation7 [shape = 'u8[8192]{0}', space=vmem, size = 0x2000, scoped, tag = 'input window, operand 3, single buffered']
    #allocation8 [shape = 's32[1]{0}', space=sflag, size = 0x4, scoped, tag = 'scoped memory for tpu_custom_call.1']
    #allocation9 [shape = 'u8[8192]{0}', space=vmem, size = 0x2000, scoped, tag = 'input window, operand 4, single buffered']
    #allocation10 [shape = 'u8[8192]{0}', space=vmem, size = 0x2000, scoped, tag = 'input window, operand 8, single buffered']
    #allocation11 [shape = 's32[1]{0}', space=sflag, size = 0x4, scoped, tag = 'scoped memory for tpu_custom_call.1']
    #allocation12 [shape = 'u8[32768]{0}', space=vmem, size = 0x8000, scoped, tag = 'output window, operand 0, single buffered']
    %15 = vsyncpa [#allocation5], 0
    %16 = vsyncpa [#allocation8], 0
    %17 = vsyncpa [#allocation11], 0
    %18 = vsyncpa [#allocation6], 0
    // Predicated region
    $region2: #{tpu_custom_call.1} parent=1 // pred_check
      _
    $region3: #{tpu_custom_call.1} parent=1 // pred_check_branch
      %20 = sbr.rel (0) target = $region5
    $region4: #{tpu_custom_call.1} parent=1 // pred_region
      _
    $region5: #{tpu_custom_call.1} parent=1 // pred_fallthru
      _
    // Predicated region
    $region6: #{tpu_custom_call.1} parent=1 // pred_check
      _
    $region7: #{tpu_custom_call.1} parent=1 // pred_check_branch
      %22 = sbr.rel (0) target = $region9
    $region8: #{tpu_custom_call.1} parent=1 // pred_region
      _
    $region9: #{tpu_custom_call.1} parent=1 // pred_fallthru
      _
    // Predicated region
    $region10: #{tpu_custom_call.1} parent=1 // pred_check
      _
    $region11: #{tpu_custom_call.1} parent=1 // pred_check_branch
      %24 = sbr.rel (0) target = $region13
    $region12: #{tpu_custom_call.1} parent=1 // pred_region
      %s26 = ssub.s32 256, 256
      %27 = vsyncadd [#allocation5], %s26
      %s28 = sshll.u32 [#allocation4], 4
      %s29 = int_to_ptr.vmem [resolvable:$true] %s28
      %34 = dma.hbm_to_vmem [thread:$0]  %s2, 256, %s29, [#allocation5], 128, 128, 8
    $region13: #{tpu_custom_call.1} parent=1 // pred_fallthru
      _
    // Predicated region
    $region14: #{tpu_custom_call.1} parent=1 // pred_check
      _
    $region15: #{tpu_custom_call.1} parent=1 // pred_check_branch
      %36 = sbr.rel (0) target = $region17
    $region16: #{tpu_custom_call.1} parent=1 // pred_region
      %s38 = ssub.s32 256, 256
      %39 = vsyncadd [#allocation8], %s38
      %s40 = sshll.u32 [#allocation7], 4
      %s41 = int_to_ptr.vmem [resolvable:$true] %s40
      %46 = dma.hbm_to_vmem [thread:$0]  %s3, 256, %s41, [#allocation8], 64, 64, 4
    $region17: #{tpu_custom_call.1} parent=1 // pred_fallthru
      _
    // Predicated region
    $region18: #{tpu_custom_call.1} parent=1 // pred_check
      _
    $region19: #{tpu_custom_call.1} parent=1 // pred_check_branch
      %48 = sbr.rel (0) target = $region21
    $region20: #{tpu_custom_call.1} parent=1 // pred_region
      %s50 = ssub.s32 256, 256
      %51 = vsyncadd [#allocation8], %s50
      %s52 = sshll.u32 [#allocation9], 4
      %s53 = int_to_ptr.vmem [resolvable:$true] %s52
      %58 = dma.hbm_to_vmem [thread:$0]  %s4, 256, %s53, [#allocation8], 64, 64, 4
    $region21: #{tpu_custom_call.1} parent=1 // pred_fallthru
      _
    // Predicated region
    $region22: #{tpu_custom_call.1} parent=1 // pred_check
      _
    $region23: #{tpu_custom_call.1} parent=1 // pred_check_branch
      %60 = sbr.rel (0) target = $region25
    $region24: #{tpu_custom_call.1} parent=1 // pred_region
      _
    $region25: #{tpu_custom_call.1} parent=1 // pred_fallthru
      _
    // Predicated region
    $region26: #{tpu_custom_call.1} parent=1 // pred_check
      _
    $region27: #{tpu_custom_call.1} parent=1 // pred_check_branch
      %62 = sbr.rel (0) target = $region29
    $region28: #{tpu_custom_call.1} parent=1 // pred_region
      _
    $region29: #{tpu_custom_call.1} parent=1 // pred_fallthru
      _
    // Predicated region
    $region30: #{tpu_custom_call.1} parent=1 // pred_check
      _
    $region31: #{tpu_custom_call.1} parent=1 // pred_check_branch
      %64 = sbr.rel (0) target = $region33
    $region32: #{tpu_custom_call.1} parent=1 // pred_region
      _
    $region33: #{tpu_custom_call.1} parent=1 // pred_fallthru
      _
    // Predicated region
    $region34: #{tpu_custom_call.1} parent=1 // pred_check
      _
    $region35: #{tpu_custom_call.1} parent=1 // pred_check_branch
      %66 = sbr.rel (0) target = $region37
    $region36: #{tpu_custom_call.1} parent=1 // pred_region
      %s68 = ssub.s32 256, 256
      %69 = vsyncadd [#allocation11], %s68
      %s70 = sshll.u32 [#allocation10], 4
      %s71 = int_to_ptr.vmem [resolvable:$true] %s70
      %76 = dma.hbm_to_vmem [thread:$0]  %s8, 256, %s71, [#allocation11], 64, 64, 4
    $region37: #{tpu_custom_call.1} parent=1 // pred_fallthru
      _
    // Predicated region
    $region38: #{tpu_custom_call.1} parent=1 // pred_check
      _
    $region39: #{tpu_custom_call.1} parent=1 // pred_check_branch
      %78 = sbr.rel (0) target = $region41
    $region40: #{tpu_custom_call.1} parent=1 // pred_region
      _
    $region41: #{tpu_custom_call.1} parent=1 // pred_fallthru
      _
    // Predicated region
    $region42: #{tpu_custom_call.1} parent=1 // pred_check
      _
    $region43: #{tpu_custom_call.1} parent=1 // pred_check_branch
      %80 = sbr.rel (0) target = $region45
    $region44: #{tpu_custom_call.1} parent=1 // pred_region
      %81 = dma.done [#allocation5], 256
    $region45: #{tpu_custom_call.1} parent=1 // pred_fallthru
      _
    // Predicated region
    $region46: #{tpu_custom_call.1} parent=1 // pred_check
      _
    $region47: #{tpu_custom_call.1} parent=1 // pred_check_branch
      %83 = sbr.rel (0) target = $region49
    $region48: #{tpu_custom_call.1} parent=1 // pred_region
      %84 = dma.done [#allocation8], 256
    $region49: #{tpu_custom_call.1} parent=1 // pred_fallthru
      _
    // Predicated region
    $region50: #{tpu_custom_call.1} parent=1 // pred_check
      _
    $region51: #{tpu_custom_call.1} parent=1 // pred_check_branch
      %86 = sbr.rel (0) target = $region53
    $region52: #{tpu_custom_call.1} parent=1 // pred_region
      %87 = dma.done [#allocation8], 256
    $region53: #{tpu_custom_call.1} parent=1 // pred_fallthru
      _
    // Predicated region
    $region54: #{tpu_custom_call.1} parent=1 // pred_check
      _
    $region55: #{tpu_custom_call.1} parent=1 // pred_check_branch
      %89 = sbr.rel (0) target = $region57
    $region56: #{tpu_custom_call.1} parent=1 // pred_region
      %90 = dma.done [#allocation11], 256
    $region57: #{tpu_custom_call.1} parent=1 // pred_fallthru
      _
    %v92 = vld [vmem:[%s0] sm:$0xf]
    %v93 = vld [vmem:[%s0 + $0x4] sm:$0xf]
    %v94 = vld [vmem:[%s0 + $0x8] sm:$0xf]
    %v95 = vld [vmem:[%s0 + $0xc] sm:$0xf]
    %v96 = vld [vmem:[%s0 + $0x10] sm:$0xf]
    %v97 = vld [vmem:[%s0 + $0x14] sm:$0xf]
    %v98 = vld [vmem:[%s0 + $0x18] sm:$0xf]
    %v99 = vld [vmem:[%s0 + $0x1c] sm:$0xf]
    %v100 = vld [vmem:[#allocation7] sm:$0xf]
    %v101 = vld [vmem:[#allocation7 + $0x4] sm:$0xf]
    %v102 = vld [vmem:[#allocation7 + $0x8] sm:$0xf]
    %v103 = vld [vmem:[#allocation7 + $0xc] sm:$0xf]
    %v104 = vld [vmem:[%s5] sm:$0x1]
    %v106 = vlaneseq
    %v107 = vshrl.u32 %v106, 7
    %v108 = vsub.s32 0, %v107
    %v109 = vrot.slane %v104, %v108
    %v119 = vunpack.c.l.b16 %v92
    %v120 = vunpack.c.l.b16 %v93
    %v121 = vunpack.c.l.b16 %v94
    %v122 = vunpack.c.l.b16 %v95
    %v123 = vunpack.c.l.b16 %v96
    %v124 = vunpack.c.l.b16 %v97
    %v125 = vunpack.c.l.b16 %v98
    %v126 = vunpack.c.l.b16 %v99
    %v127 = vpack.c.b16 %v120, %v119
    %v128 = vpack.c.b16 %v122, %v121
    %v129 = vpack.c.b16 %v124, %v123
    %v130 = vpack.c.b16 %v126, %v125
    %v135 = vunpack.c.l.b16 %v100
    %v136 = vunpack.c.l.b16 %v101
    %v137 = vunpack.c.l.b16 %v102
    %v138 = vunpack.c.l.b16 %v103
    %v139 = vpack.c.b16 %v136, %v135
    %v140 = vpack.c.b16 %v138, %v137
    %vm143 = vcmask 261120
    %v145 = vsel %vm143, %v127, 0
    %v148 = vsel %vm143, %v128, 0
    %v151 = vsel %vm143, %v129, 0
    %v154 = vsel %vm143, %v130, 0
    %156 = vmatprep.subr.bf16.mxu0 0
    %157 = vmatpush1.bf16.msra.mxu0 0
    %158 = vmatprep.subr.bf16.mxu0 0
    %159 = vmatpush1.bf16.msra.mxu0 0
    %160 = vmatprep.subr.bf16.mxu0 0
    %161 = vmatpush1.bf16.msra.mxu0 0
    %162 = vmatprep.subr.bf16.mxu0 0
    %163 = vmatpush1.bf16.msra.mxu0 0
    %164 = vmatprep.subr.bf16.mxu0 0
    %165 = vmatpush1.bf16.msra.mxu0 0
    %166 = vmatprep.subr.bf16.mxu0 0
    %167 = vmatpush1.bf16.msra.mxu0 0
    %168 = vmatprep.subr.bf16.mxu0 0
    %169 = vmatpush1.bf16.msra.mxu0 %v140
    %170 = vmatprep.subr.bf16.mxu0 0
    %171 = vmatpush1.bf16.msra.mxu0 %v139
    %172 = vmatprep.subr.bf16.mxu0 0
    %173 = vmatpush2.bf16.msra.mxu0 0
    %174 = vmatprep.subr.bf16.mxu0 0
    %175 = vmatpush2.bf16.msra.mxu0 0
    %176 = vmatprep.subr.bf16.mxu0 0
    %177 = vmatpush2.bf16.msra.mxu0 0
    %178 = vmatprep.subr.bf16.mxu0 0
    %179 = vmatpush2.bf16.msra.mxu0 0
    %180 = vmatprep.subr.bf16.mxu0 0
    %181 = vmatpush2.bf16.msra.mxu0 0
    %182 = vmatprep.subr.bf16.mxu0 0
    %183 = vmatpush2.bf16.msra.mxu0 0
    %184 = vmatprep.subr.bf16.mxu0 0
    %185 = vmatpush2.bf16.msra.mxu0 0
    %186 = vmatprep.subr.bf16.mxu0 0
    %187 = vmatpush2.bf16.msra.mxu0 0
    %188 = vmatprep.mubr.bf16.mxu0 0
    %189 = vmatmul.mubr.bf16.gmra.mxu0 %v145
    %v190 = vpop.f32.mrf.mxu0
    %v191 = vadd.f32 %v109, %v190
    %v192 = vpop.f32.mrf.mxu0
    %v193 = vpop.f32.mrf.mxu0
    %v194 = vadd.f32 %v109, %v193
    %v195 = vpop.f32.mrf.mxu0
    %196 = vmatprep.mubr.bf16.mxu0 0
    %197 = vmatmul.mubr.bf16.gmra.mxu0 %v148
    %v198 = vpop.f32.mrf.mxu0
    %v199 = vadd.f32 %v109, %v198
    %v200 = vpop.f32.mrf.mxu0
    %v201 = vpop.f32.mrf.mxu0
    %v202 = vadd.f32 %v109, %v201
    %v203 = vpop.f32.mrf.mxu0
    %204 = vmatprep.mubr.bf16.mxu0 0
    %205 = vmatmul.mubr.bf16.gmra.mxu0 %v151
    %v206 = vpop.f32.mrf.mxu0
    %v207 = vadd.f32 %v109, %v206
    %v208 = vpop.f32.mrf.mxu0
    %v209 = vpop.f32.mrf.mxu0
    %v210 = vadd.f32 %v109, %v209
    %v211 = vpop.f32.mrf.mxu0
    %212 = vmatprep.mubr.bf16.mxu0 0
    %213 = vmatmul.mubr.bf16.gmra.mxu0 %v154
    %v214 = vpop.f32.mrf.mxu0
    %v215 = vadd.f32 %v109, %v214
    %v216 = vpop.f32.mrf.mxu0
    %v217 = vpop.f32.mrf.mxu0
    %v218 = vadd.f32 %v109, %v217
    %v219 = vpop.f32.mrf.mxu0
    %220 = vdwg.mxu0
    %221 = vst [vmem:[#allocation2] sm:$0xff] %v191
    %222 = vst [vmem:[#allocation2 + $0x8] sm:$0xff] %v194
    %223 = vst [vmem:[#allocation2 + $0x10] sm:$0xff] %v199
    %224 = vst [vmem:[#allocation2 + $0x18] sm:$0xff] %v202
    %225 = vst [vmem:[#allocation2 + $0x20] sm:$0xff] %v207
    %226 = vst [vmem:[#allocation2 + $0x28] sm:$0xff] %v210
    %227 = vst [vmem:[#allocation2 + $0x30] sm:$0xff] %v215
    %228 = vst [vmem:[#allocation2 + $0x38] sm:$0xff] %v218
    %v229 = vld [vmem:[%s7] sm:$0x1]
    %v230 = vld [vmem:[%s1] sm:$0xff]
    %s231 = scalar_lea.vmem %s1, 8
    %v232 = vld [vmem:[%s231] sm:$0xff]
    %v233 = vld [vmem:[#allocation4] sm:$0xff]
    %s234 = scalar_lea.vmem [#allocation4], 8
    %v235 = vld [vmem:[%s234] sm:$0xff]
    %v236 = vld [vmem:[#allocation2] sm:$0xff]
    %v237 = vpack.c.bf16 %v230, %v230
    %v238 = vld [vmem:[#allocation9] sm:$0xf]
    %v239 = vld [vmem:[#allocation9 + $0x4] sm:$0xf]
    %v240 = vld [vmem:[#allocation9 + $0x8] sm:$0xf]
    %v241 = vld [vmem:[#allocation9 + $0xc] sm:$0xf]
    %v246 = vunpack.c.l.b16 %v238
    %v247 = vunpack.c.l.b16 %v239
    %v248 = vunpack.c.l.b16 %v240
    %v249 = vunpack.c.l.b16 %v241
    %v250 = vpack.c.b16 %v247, %v246
    %v251 = vpack.c.b16 %v249, %v248
    %v255 = vsel %vm143, %v237, 0
    %257 = vmatprep.subr.bf16.mxu0 0
    %258 = vmatpush1.bf16.msra.mxu0 0
    %259 = vmatprep.subr.bf16.mxu0 0
    %260 = vmatpush1.bf16.msra.mxu0 0
    %261 = vmatprep.subr.bf16.mxu0 0
    %262 = vmatpush1.bf16.msra.mxu0 0
    %263 = vmatprep.subr.bf16.mxu0 0
    %264 = vmatpush1.bf16.msra.mxu0 0
    %265 = vmatprep.subr.bf16.mxu0 0
    %266 = vmatpush1.bf16.msra.mxu0 0
    %267 = vmatprep.subr.bf16.mxu0 0
    %268 = vmatpush1.bf16.msra.mxu0 0
    %269 = vmatprep.subr.bf16.mxu0 0
    %270 = vmatpush1.bf16.msra.mxu0 %v251
    %271 = vmatprep.subr.bf16.mxu0 0
    %272 = vmatpush1.bf16.msra.mxu0 %v250
    %273 = vmatprep.subr.bf16.mxu0 0
    %274 = vmatpush2.bf16.msra.mxu0 0
    %275 = vmatprep.subr.bf16.mxu0 0
    %276 = vmatpush2.bf16.msra.mxu0 0
    %277 = vmatprep.subr.bf16.mxu0 0
    %278 = vmatpush2.bf16.msra.mxu0 0
    %279 = vmatprep.subr.bf16.mxu0 0
    %280 = vmatpush2.bf16.msra.mxu0 0
    %281 = vmatprep.subr.bf16.mxu0 0
    %282 = vmatpush2.bf16.msra.mxu0 0
    %283 = vmatprep.subr.bf16.mxu0 0
    %284 = vmatpush2.bf16.msra.mxu0 0
    %285 = vmatprep.subr.bf16.mxu0 0
    %286 = vmatpush2.bf16.msra.mxu0 0
    %287 = vmatprep.subr.bf16.mxu0 0
    %288 = vmatpush2.bf16.msra.mxu0 0
    %289 = vmatprep.mubr.bf16.mxu0 0
    %290 = vmatmul.mubr.bf16.gmra.mxu0 %v255
    %v291 = vpop.f32.mrf.mxu0
    %v292 = vadd.f32 0.0, %v291
    %v293 = vpop.f32.mrf.mxu0
    %v294 = vpop.f32.mrf.mxu0
    %v295 = vpop.f32.mrf.mxu0
    %296 = vdwg.mxu0
    %v297 = vadd.f32 %v236, %v292
    %v298 = vxor.u32 %v297, 2147483648
    %v299 = vmul.f32 %v298, 1.442695
    %v300 = vpow.pop %v299
    %v301 = vadd.f32 %v300, 1.0
    %v302 = vrcp.pop %v301
    %v303 = vmul.f32 1.0, %v302
    %v304 = vmul.f32 %v303, 2.0
    %v305 = vsub.f32 %v304, 1.0
    %307 = vrot.lane.b32.xlu0 %v233, 32
    %v308 = vpop.permute.xlu0 %307
    %v310 = vmul.f32 %v303, %v308
    %312 = vrot.lane.b32.xlu0 %v305, 64
    %v313 = vpop.permute.xlu0 %312
    %v315 = vmul.f32 %v303, %v313
    %317 = vrot.lane.b32.xlu0 %v315, 32
    %v318 = vpop.permute.xlu0 %317
    %v320 = vadd.f32 %v310, %v318
    %v321 = vtanh.pop %v320
    %323 = vrot.lane.b32.xlu0 %v321, 64
    %v324 = vpop.permute.xlu0 %323
    %v326 = vmul.f32 %v303, %v324
    %v327 = vld [vmem:[#allocation2 + $0x8] sm:$0xff]
    %v328 = vpack.c.bf16 %v326, %v326
    %330 = vrot.lane.b32.xlu0 %v328, 32
    %v331 = vpop.permute.xlu0 %330
    %v333 = vsel %vm143, %v331, 0
    %335 = vmatprep.subr.bf16.mxu0 0
    %336 = vmatpush1.bf16.msra.mxu0 0
    %337 = vmatprep.subr.bf16.mxu0 0
    %338 = vmatpush1.bf16.msra.mxu0 0
    %339 = vmatprep.subr.bf16.mxu0 0
    %340 = vmatpush1.bf16.msra.mxu0 0
    %341 = vmatprep.subr.bf16.mxu0 0
    %342 = vmatpush1.bf16.msra.mxu0 0
    %343 = vmatprep.subr.bf16.mxu0 0
    %344 = vmatpush1.bf16.msra.mxu0 0
    %345 = vmatprep.subr.bf16.mxu0 0
    %346 = vmatpush1.bf16.msra.mxu0 0
    %347 = vmatprep.subr.bf16.mxu0 0
    %348 = vmatpush1.bf16.msra.mxu0 %v251
    %349 = vmatprep.subr.bf16.mxu0 0
    %350 = vmatpush1.bf16.msra.mxu0 %v250
    %351 = vmatprep.subr.bf16.mxu0 0
    %352 = vmatpush2.bf16.msra.mxu0 0
    %353 = vmatprep.subr.bf16.mxu0 0
    %354 = vmatpush2.bf16.msra.mxu0 0
    %355 = vmatprep.subr.bf16.mxu0 0
    %356 = vmatpush2.bf16.msra.mxu0 0
    %357 = vmatprep.subr.bf16.mxu0 0
    %358 = vmatpush2.bf16.msra.mxu0 0
    %359 = vmatprep.subr.bf16.mxu0 0
    %360 = vmatpush2.bf16.msra.mxu0 0
    %361 = vmatprep.subr.bf16.mxu0 0
    %362 = vmatpush2.bf16.msra.mxu0 0
    %363 = vmatprep.subr.bf16.mxu0 0
    %364 = vmatpush2.bf16.msra.mxu0 0
    %365 = vmatprep.subr.bf16.mxu0 0
    %366 = vmatpush2.bf16.msra.mxu0 0
    %367 = vmatprep.mubr.bf16.mxu0 0
    %368 = vmatmul.mubr.bf16.gmra.mxu0 %v333
    %v369 = vpop.f32.mrf.mxu0
    %v370 = vadd.f32 0.0, %v369
    %v371 = vpop.f32.mrf.mxu0
    %v372 = vpop.f32.mrf.mxu0
    %v373 = vpop.f32.mrf.mxu0
    %374 = vdwg.mxu0
    %v375 = vadd.f32 %v327, %v370
    %v376 = vxor.u32 %v375, 2147483648
    %v377 = vmul.f32 %v376, 1.442695
    %v378 = vpow.pop %v377
    %v379 = vadd.f32 %v378, 1.0
    %v380 = vrcp.pop %v379
    %v381 = vmul.f32 1.0, %v380
    %v382 = vmul.f32 %v381, 2.0
    %v383 = vsub.f32 %v382, 1.0
    %v384 = vmul.f32 %v381, %v320
    %386 = vrot.lane.b32.xlu0 %v383, 64
    %v387 = vpop.permute.xlu0 %386
    %v389 = vmul.f32 %v381, %v387
    %391 = vrot.lane.b32.xlu0 %v389, 32
    %v392 = vpop.permute.xlu0 %391
    %v394 = vadd.f32 %v384, %v392
    %v395 = vtanh.pop %v394
    %397 = vrot.lane.b32.xlu0 %v395, 64
    %v398 = vpop.permute.xlu0 %397
    %v400 = vmul.f32 %v381, %v398
    %v401 = vpack.c.bf16 %v232, %v232
    %403 = vrot.lane.b32.xlu0 %v401, 32
    %v404 = vpop.permute.xlu0 %403
    %v406 = vsel %vm143, %v331, %v404
    %v407 = vld [vmem:[%s6] sm:$0xf]
    %v408 = vld [vmem:[%s6 + $0x4] sm:$0xf]
    %v409 = vld [vmem:[%s6 + $0x8] sm:$0xf]
    %v410 = vld [vmem:[%s6 + $0xc] sm:$0xf]
    %v411 = vld [vmem:[%s6 + $0x10] sm:$0xf]
    %v412 = vld [vmem:[%s6 + $0x14] sm:$0xf]
    %v413 = vld [vmem:[%s6 + $0x18] sm:$0xf]
    %v414 = vld [vmem:[%s6 + $0x1c] sm:$0xf]
    %v416 = vlaneseq
    %v417 = vshrl.u32 %v416, 7
    %v418 = vsub.s32 0, %v417
    %v419 = vrot.slane %v229, %v418
    %v429 = vunpack.c.l.b16 %v407
    %v430 = vunpack.c.l.b16 %v408
    %v431 = vunpack.c.l.b16 %v409
    %v432 = vunpack.c.l.b16 %v410
    %v433 = vunpack.c.l.b16 %v411
    %v434 = vunpack.c.l.b16 %v412
    %v435 = vunpack.c.l.b16 %v413
    %v436 = vunpack.c.l.b16 %v414
    %v437 = vpack.c.b16 %v430, %v429
    %v438 = vpack.c.b16 %v432, %v431
    %v439 = vpack.c.b16 %v434, %v433
    %v440 = vpack.c.b16 %v436, %v435
    %vm445 = vcmask 523264
    %v446 = vsel %vm445, %v406, 0
    %448 = vmatprep.subr.bf16.mxu0 0
    %449 = vmatpush1.bf16.msra.mxu0 0
    %450 = vmatprep.subr.bf16.mxu0 0
    %451 = vmatpush1.bf16.msra.mxu0 0
    %452 = vmatprep.subr.bf16.mxu0 0
    %453 = vmatpush1.bf16.msra.mxu0 0
    %454 = vmatprep.subr.bf16.mxu0 0
    %455 = vmatpush1.bf16.msra.mxu0 0
    %456 = vmatprep.subr.bf16.mxu0 0
    %457 = vmatpush1.bf16.msra.mxu0 %v440
    %458 = vmatprep.subr.bf16.mxu0 0
    %459 = vmatpush1.bf16.msra.mxu0 %v439
    %460 = vmatprep.subr.bf16.mxu0 0
    %461 = vmatpush1.bf16.msra.mxu0 %v438
    %462 = vmatprep.subr.bf16.mxu0 0
    %463 = vmatpush1.bf16.msra.mxu0 %v437
    %464 = vmatprep.subr.bf16.mxu0 0
    %465 = vmatpush2.bf16.msra.mxu0 0
    %466 = vmatprep.subr.bf16.mxu0 0
    %467 = vmatpush2.bf16.msra.mxu0 0
    %468 = vmatprep.subr.bf16.mxu0 0
    %469 = vmatpush2.bf16.msra.mxu0 0
    %470 = vmatprep.subr.bf16.mxu0 0
    %471 = vmatpush2.bf16.msra.mxu0 0
    %472 = vmatprep.subr.bf16.mxu0 0
    %473 = vmatpush2.bf16.msra.mxu0 0
    %474 = vmatprep.subr.bf16.mxu0 0
    %475 = vmatpush2.bf16.msra.mxu0 0
    %476 = vmatprep.subr.bf16.mxu0 0
    %477 = vmatpush2.bf16.msra.mxu0 0
    %478 = vmatprep.subr.bf16.mxu0 0
    %479 = vmatpush2.bf16.msra.mxu0 0
    %480 = vmatprep.mubr.bf16.mxu0 0
    %481 = vmatmul.mubr.bf16.gmra.mxu0 %v446
    %v482 = vpop.f32.mrf.mxu0
    %v483 = vadd.f32 %v419, %v482
    %v484 = vpop.f32.mrf.mxu0
    %v485 = vpop.f32.mrf.mxu0
    %v486 = vpop.f32.mrf.mxu0
    %487 = vdwg.mxu0
    %v488 = vxor.u32 %v483, 2147483648
    %v489 = vmul.f32 %v488, 1.442695
    %v490 = vpow.pop %v489
    %v491 = vadd.f32 %v490, 1.0
    %v492 = vrcp.pop %v491
    %v493 = vmul.f32 1.0, %v492
    %v494 = vmul.f32 %v493, 2.0
    %v495 = vsub.f32 %v494, 1.0
    %497 = vrot.lane.b32.xlu0 %v235, 32
    %v498 = vpop.permute.xlu0 %497
    %v500 = vmul.f32 %v493, %v498
    %502 = vrot.lane.b32.xlu0 %v495, 64
    %v503 = vpop.permute.xlu0 %502
    %v505 = vmul.f32 %v493, %v503
    %507 = vrot.lane.b32.xlu0 %v505, 32
    %v508 = vpop.permute.xlu0 %507
    %v510 = vadd.f32 %v500, %v508
    %v511 = vtanh.pop %v510
    %513 = vrot.lane.b32.xlu0 %v511, 64
    %v514 = vpop.permute.xlu0 %513
    %v516 = vmul.f32 %v493, %v514
    %518 = vrot.lane.b32.xlu0 %v516, 32
    %v519 = vpop.permute.xlu0 %518
    %521 = vst.msk [vmem:[#allocation3] sm:$0xff] %vm143, %v519
    %v522 = vld [vmem:[#allocation2 + $0x10] sm:$0xff]
    %v523 = vpack.c.bf16 %v400, %v400
    %v524 = vld [vmem:[#allocation9] sm:$0xf]
    %v525 = vld [vmem:[#allocation9 + $0x4] sm:$0xf]
    %v526 = vld [vmem:[#allocation9 + $0x8] sm:$0xf]
    %v527 = vld [vmem:[#allocation9 + $0xc] sm:$0xf]
    %529 = vrot.lane.b32.xlu0 %v523, 32
    %v530 = vpop.permute.xlu0 %529
    %v535 = vunpack.c.l.b16 %v524
    %v536 = vunpack.c.l.b16 %v525
    %v537 = vunpack.c.l.b16 %v526
    %v538 = vunpack.c.l.b16 %v527
    %v539 = vpack.c.b16 %v536, %v535
    %v540 = vpack.c.b16 %v538, %v537
    %v544 = vsel %vm143, %v530, 0
    %546 = vmatprep.subr.bf16.mxu0 0
    %547 = vmatpush1.bf16.msra.mxu0 0
    %548 = vmatprep.subr.bf16.mxu0 0
    %549 = vmatpush1.bf16.msra.mxu0 0
    %550 = vmatprep.subr.bf16.mxu0 0
    %551 = vmatpush1.bf16.msra.mxu0 0
    %552 = vmatprep.subr.bf16.mxu0 0
    %553 = vmatpush1.bf16.msra.mxu0 0
    %554 = vmatprep.subr.bf16.mxu0 0
    %555 = vmatpush1.bf16.msra.mxu0 0
    %556 = vmatprep.subr.bf16.mxu0 0
    %557 = vmatpush1.bf16.msra.mxu0 0
    %558 = vmatprep.subr.bf16.mxu0 0
    %559 = vmatpush1.bf16.msra.mxu0 %v540
    %560 = vmatprep.subr.bf16.mxu0 0
    %561 = vmatpush1.bf16.msra.mxu0 %v539
    %562 = vmatprep.subr.bf16.mxu0 0
    %563 = vmatpush2.bf16.msra.mxu0 0
    %564 = vmatprep.subr.bf16.mxu0 0
    %565 = vmatpush2.bf16.msra.mxu0 0
    %566 = vmatprep.subr.bf16.mxu0 0
    %567 = vmatpush2.bf16.msra.mxu0 0
    %568 = vmatprep.subr.bf16.mxu0 0
    %569 = vmatpush2.bf16.msra.mxu0 0
    %570 = vmatprep.subr.bf16.mxu0 0
    %571 = vmatpush2.bf16.msra.mxu0 0
    %572 = vmatprep.subr.bf16.mxu0 0
    %573 = vmatpush2.bf16.msra.mxu0 0
    %574 = vmatprep.subr.bf16.mxu0 0
    %575 = vmatpush2.bf16.msra.mxu0 0
    %576 = vmatprep.subr.bf16.mxu0 0
    %577 = vmatpush2.bf16.msra.mxu0 0
    %578 = vmatprep.mubr.bf16.mxu0 0
    %579 = vmatmul.mubr.bf16.gmra.mxu0 %v544
    %v580 = vpop.f32.mrf.mxu0
    %v581 = vadd.f32 0.0, %v580
    %v582 = vpop.f32.mrf.mxu0
    %v583 = vpop.f32.mrf.mxu0
    %v584 = vpop.f32.mrf.mxu0
    %585 = vdwg.mxu0
    %v586 = vadd.f32 %v522, %v581
    %v587 = vxor.u32 %v586, 2147483648
    %v588 = vmul.f32 %v587, 1.442695
    %v589 = vpow.pop %v588
    %v590 = vadd.f32 %v589, 1.0
    %v591 = vrcp.pop %v590
    %v592 = vmul.f32 1.0, %v591
    %v593 = vmul.f32 %v592, 2.0
    %v594 = vsub.f32 %v593, 1.0
    %v595 = vmul.f32 %v592, %v394
    %597 = vrot.lane.b32.xlu0 %v594, 64
    %v598 = vpop.permute.xlu0 %597
    %v600 = vmul.f32 %v592, %v598
    %602 = vrot.lane.b32.xlu0 %v600, 32
    %v603 = vpop.permute.xlu0 %602
    %v605 = vadd.f32 %v595, %v603
    %v606 = vtanh.pop %v605
    %608 = vrot.lane.b32.xlu0 %v606, 64
    %v609 = vpop.permute.xlu0 %608
    %v611 = vmul.f32 %v592, %v609
    %v612 = vpack.c.bf16 %v516, %v516
    %614 = vrot.lane.b32.xlu0 %v612, 64
    %v615 = vpop.permute.xlu0 %614
    %v617 = vsel %vm143, %v530, %v615
    %v618 = vld [vmem:[%s6] sm:$0xf]
    %v619 = vld [vmem:[%s6 + $0x4] sm:$0xf]
    %v620 = vld [vmem:[%s6 + $0x8] sm:$0xf]
    %v621 = vld [vmem:[%s6 + $0xc] sm:$0xf]
    %v622 = vld [vmem:[%s6 + $0x10] sm:$0xf]
    %v623 = vld [vmem:[%s6 + $0x14] sm:$0xf]
    %v624 = vld [vmem:[%s6 + $0x18] sm:$0xf]
    %v625 = vld [vmem:[%s6 + $0x1c] sm:$0xf]
    %v634 = vunpack.c.l.b16 %v618
    %v635 = vunpack.c.l.b16 %v619
    %v636 = vunpack.c.l.b16 %v620
    %v637 = vunpack.c.l.b16 %v621
    %v638 = vunpack.c.l.b16 %v622
    %v639 = vunpack.c.l.b16 %v623
    %v640 = vunpack.c.l.b16 %v624
    %v641 = vunpack.c.l.b16 %v625
    %v642 = vpack.c.b16 %v635, %v634
    %v643 = vpack.c.b16 %v637, %v636
    %v644 = vpack.c.b16 %v639, %v638
    %v645 = vpack.c.b16 %v641, %v640
    %v650 = vsel %vm445, %v617, 0
    %652 = vmatprep.subr.bf16.mxu0 0
    %653 = vmatpush1.bf16.msra.mxu0 0
    %654 = vmatprep.subr.bf16.mxu0 0
    %655 = vmatpush1.bf16.msra.mxu0 0
    %656 = vmatprep.subr.bf16.mxu0 0
    %657 = vmatpush1.bf16.msra.mxu0 0
    %658 = vmatprep.subr.bf16.mxu0 0
    %659 = vmatpush1.bf16.msra.mxu0 0
    %660 = vmatprep.subr.bf16.mxu0 0
    %661 = vmatpush1.bf16.msra.mxu0 %v645
    %662 = vmatprep.subr.bf16.mxu0 0
    %663 = vmatpush1.bf16.msra.mxu0 %v644
    %664 = vmatprep.subr.bf16.mxu0 0
    %665 = vmatpush1.bf16.msra.mxu0 %v643
    %666 = vmatprep.subr.bf16.mxu0 0
    %667 = vmatpush1.bf16.msra.mxu0 %v642
    %668 = vmatprep.subr.bf16.mxu0 0
    %669 = vmatpush2.bf16.msra.mxu0 0
    %670 = vmatprep.subr.bf16.mxu0 0
    %671 = vmatpush2.bf16.msra.mxu0 0
    %672 = vmatprep.subr.bf16.mxu0 0
    %673 = vmatpush2.bf16.msra.mxu0 0
    %674 = vmatprep.subr.bf16.mxu0 0
    %675 = vmatpush2.bf16.msra.mxu0 0
    %676 = vmatprep.subr.bf16.mxu0 0
    %677 = vmatpush2.bf16.msra.mxu0 0
    %678 = vmatprep.subr.bf16.mxu0 0
    %679 = vmatpush2.bf16.msra.mxu0 0
    %680 = vmatprep.subr.bf16.mxu0 0
    %681 = vmatpush2.bf16.msra.mxu0 0
    %682 = vmatprep.subr.bf16.mxu0 0
    %683 = vmatpush2.bf16.msra.mxu0 0
    %684 = vmatprep.mubr.bf16.mxu0 0
    %685 = vmatmul.mubr.bf16.gmra.mxu0 %v650
    %v686 = vpop.f32.mrf.mxu0
    %v687 = vadd.f32 %v419, %v686
    %v688 = vpop.f32.mrf.mxu0
    %v689 = vpop.f32.mrf.mxu0
    %v690 = vpop.f32.mrf.mxu0
    %691 = vdwg.mxu0
    %v692 = vxor.u32 %v687, 2147483648
    %v693 = vmul.f32 %v692, 1.442695
    %v694 = vpow.pop %v693
    %v695 = vadd.f32 %v694, 1.0
    %v696 = vrcp.pop %v695
    %v697 = vmul.f32 1.0, %v696
    %v698 = vmul.f32 %v697, 2.0
    %v699 = vsub.f32 %v698, 1.0
    %v700 = vmul.f32 %v697, %v510
    %702 = vrot.lane.b32.xlu0 %v699, 64
    %v703 = vpop.permute.xlu0 %702
    %v705 = vmul.f32 %v697, %v703
    %707 = vrot.lane.b32.xlu0 %v705, 32
    %v708 = vpop.permute.xlu0 %707
    %v710 = vadd.f32 %v700, %v708
    %v711 = vtanh.pop %v710
    %713 = vrot.lane.b32.xlu0 %v711, 64
    %v714 = vpop.permute.xlu0 %713
    %v716 = vmul.f32 %v697, %v714
    %718 = vrot.lane.b32.xlu0 %v716, 32
    %v719 = vpop.permute.xlu0 %718
    %721 = vst.msk [vmem:[#allocation3 + $0x8] sm:$0xff] %vm143, %v719
    %v722 = vld [vmem:[#allocation2 + $0x18] sm:$0xff]
    %v723 = vpack.c.bf16 %v611, %v611
    %v724 = vld [vmem:[#allocation9] sm:$0xf]
    %v725 = vld [vmem:[#allocation9 + $0x4] sm:$0xf]
    %v726 = vld [vmem:[#allocation9 + $0x8] sm:$0xf]
    %v727 = vld [vmem:[#allocation9 + $0xc] sm:$0xf]
    %729 = vrot.lane.b32.xlu0 %v723, 32
    %v730 = vpop.permute.xlu0 %729
    %v735 = vunpack.c.l.b16 %v724
    %v736 = vunpack.c.l.b16 %v725
    %v737 = vunpack.c.l.b16 %v726
    %v738 = vunpack.c.l.b16 %v727
    %v739 = vpack.c.b16 %v736, %v735
    %v740 = vpack.c.b16 %v738, %v737
    %v744 = vsel %vm143, %v730, 0
    %746 = vmatprep.subr.bf16.mxu0 0
    %747 = vmatpush1.bf16.msra.mxu0 0
    %748 = vmatprep.subr.bf16.mxu0 0
    %749 = vmatpush1.bf16.msra.mxu0 0
    %750 = vmatprep.subr.bf16.mxu0 0
    %751 = vmatpush1.bf16.msra.mxu0 0
    %752 = vmatprep.subr.bf16.mxu0 0
    %753 = vmatpush1.bf16.msra.mxu0 0
    %754 = vmatprep.subr.bf16.mxu0 0
    %755 = vmatpush1.bf16.msra.mxu0 0
    %756 = vmatprep.subr.bf16.mxu0 0
    %757 = vmatpush1.bf16.msra.mxu0 0
    %758 = vmatprep.subr.bf16.mxu0 0
    %759 = vmatpush1.bf16.msra.mxu0 %v740
    %760 = vmatprep.subr.bf16.mxu0 0
    %761 = vmatpush1.bf16.msra.mxu0 %v739
    %762 = vmatprep.subr.bf16.mxu0 0
    %763 = vmatpush2.bf16.msra.mxu0 0
    %764 = vmatprep.subr.bf16.mxu0 0
    %765 = vmatpush2.bf16.msra.mxu0 0
    %766 = vmatprep.subr.bf16.mxu0 0
    %767 = vmatpush2.bf16.msra.mxu0 0
    %768 = vmatprep.subr.bf16.mxu0 0
    %769 = vmatpush2.bf16.msra.mxu0 0
    %770 = vmatprep.subr.bf16.mxu0 0
    %771 = vmatpush2.bf16.msra.mxu0 0
    %772 = vmatprep.subr.bf16.mxu0 0
    %773 = vmatpush2.bf16.msra.mxu0 0
    %774 = vmatprep.subr.bf16.mxu0 0
    %775 = vmatpush2.bf16.msra.mxu0 0
    %776 = vmatprep.subr.bf16.mxu0 0
    %777 = vmatpush2.bf16.msra.mxu0 0
    %778 = vmatprep.mubr.bf16.mxu0 0
    %779 = vmatmul.mubr.bf16.gmra.mxu0 %v744
    %v780 = vpop.f32.mrf.mxu0
    %v781 = vadd.f32 0.0, %v780
    %v782 = vpop.f32.mrf.mxu0
    %v783 = vpop.f32.mrf.mxu0
    %v784 = vpop.f32.mrf.mxu0
    %785 = vdwg.mxu0
    %v786 = vadd.f32 %v722, %v781
    %v787 = vxor.u32 %v786, 2147483648
    %v788 = vmul.f32 %v787, 1.442695
    %v789 = vpow.pop %v788
    %v790 = vadd.f32 %v789, 1.0
    %v791 = vrcp.pop %v790
    %v792 = vmul.f32 1.0, %v791
    %v793 = vmul.f32 %v792, 2.0
    %v794 = vsub.f32 %v793, 1.0
    %v795 = vmul.f32 %v792, %v605
    %797 = vrot.lane.b32.xlu0 %v794, 64
    %v798 = vpop.permute.xlu0 %797
    %v800 = vmul.f32 %v792, %v798
    %802 = vrot.lane.b32.xlu0 %v800, 32
    %v803 = vpop.permute.xlu0 %802
    %v805 = vadd.f32 %v795, %v803
    %v806 = vtanh.pop %v805
    %808 = vrot.lane.b32.xlu0 %v806, 64
    %v809 = vpop.permute.xlu0 %808
    %v811 = vmul.f32 %v792, %v809
    %v812 = vpack.c.bf16 %v716, %v716
    %814 = vrot.lane.b32.xlu0 %v812, 64
    %v815 = vpop.permute.xlu0 %814
    %v817 = vsel %vm143, %v730, %v815
    %v818 = vld [vmem:[%s6] sm:$0xf]
    %v819 = vld [vmem:[%s6 + $0x4] sm:$0xf]
    %v820 = vld [vmem:[%s6 + $0x8] sm:$0xf]
    %v821 = vld [vmem:[%s6 + $0xc] sm:$0xf]
    %v822 = vld [vmem:[%s6 + $0x10] sm:$0xf]
    %v823 = vld [vmem:[%s6 + $0x14] sm:$0xf]
    %v824 = vld [vmem:[%s6 + $0x18] sm:$0xf]
    %v825 = vld [vmem:[%s6 + $0x1c] sm:$0xf]
    %v834 = vunpack.c.l.b16 %v818
    %v835 = vunpack.c.l.b16 %v819
    %v836 = vunpack.c.l.b16 %v820
    %v837 = vunpack.c.l.b16 %v821
    %v838 = vunpack.c.l.b16 %v822
    %v839 = vunpack.c.l.b16 %v823
    %v840 = vunpack.c.l.b16 %v824
    %v841 = vunpack.c.l.b16 %v825
    %v842 = vpack.c.b16 %v835, %v834
    %v843 = vpack.c.b16 %v837, %v836
    %v844 = vpack.c.b16 %v839, %v838
    %v845 = vpack.c.b16 %v841, %v840
    %v850 = vsel %vm445, %v817, 0
    %852 = vmatprep.subr.bf16.mxu0 0
    %853 = vmatpush1.bf16.msra.mxu0 0
    %854 = vmatprep.subr.bf16.mxu0 0
    %855 = vmatpush1.bf16.msra.mxu0 0
    %856 = vmatprep.subr.bf16.mxu0 0
    %857 = vmatpush1.bf16.msra.mxu0 0
    %858 = vmatprep.subr.bf16.mxu0 0
    %859 = vmatpush1.bf16.msra.mxu0 0
    %860 = vmatprep.subr.bf16.mxu0 0
    %861 = vmatpush1.bf16.msra.mxu0 %v845
    %862 = vmatprep.subr.bf16.mxu0 0
    %863 = vmatpush1.bf16.msra.mxu0 %v844
    %864 = vmatprep.subr.bf16.mxu0 0
    %865 = vmatpush1.bf16.msra.mxu0 %v843
    %866 = vmatprep.subr.bf16.mxu0 0
    %867 = vmatpush1.bf16.msra.mxu0 %v842
    %868 = vmatprep.subr.bf16.mxu0 0
    %869 = vmatpush2.bf16.msra.mxu0 0
    %870 = vmatprep.subr.bf16.mxu0 0
    %871 = vmatpush2.bf16.msra.mxu0 0
    %872 = vmatprep.subr.bf16.mxu0 0
    %873 = vmatpush2.bf16.msra.mxu0 0
    %874 = vmatprep.subr.bf16.mxu0 0
    %875 = vmatpush2.bf16.msra.mxu0 0
    %876 = vmatprep.subr.bf16.mxu0 0
    %877 = vmatpush2.bf16.msra.mxu0 0
    %878 = vmatprep.subr.bf16.mxu0 0
    %879 = vmatpush2.bf16.msra.mxu0 0
    %880 = vmatprep.subr.bf16.mxu0 0
    %881 = vmatpush2.bf16.msra.mxu0 0
    %882 = vmatprep.subr.bf16.mxu0 0
    %883 = vmatpush2.bf16.msra.mxu0 0
    %884 = vmatprep.mubr.bf16.mxu0 0
    %885 = vmatmul.mubr.bf16.gmra.mxu0 %v850
    %v886 = vpop.f32.mrf.mxu0
    %v887 = vadd.f32 %v419, %v886
    %v888 = vpop.f32.mrf.mxu0
    %v889 = vpop.f32.mrf.mxu0
    %v890 = vpop.f32.mrf.mxu0
    %891 = vdwg.mxu0
    %v892 = vxor.u32 %v887, 2147483648
    %v893 = vmul.f32 %v892, 1.442695
    %v894 = vpow.pop %v893
    %v895 = vadd.f32 %v894, 1.0
    %v896 = vrcp.pop %v895
    %v897 = vmul.f32 1.0, %v896
    %v898 = vmul.f32 %v897, 2.0
    %v899 = vsub.f32 %v898, 1.0
    %v900 = vmul.f32 %v897, %v710
    %902 = vrot.lane.b32.xlu0 %v899, 64
    %v903 = vpop.permute.xlu0 %902
    %v905 = vmul.f32 %v897, %v903
    %907 = vrot.lane.b32.xlu0 %v905, 32
    %v908 = vpop.permute.xlu0 %907
    %v910 = vadd.f32 %v900, %v908
    %v911 = vtanh.pop %v910
    %913 = vrot.lane.b32.xlu0 %v911, 64
    %v914 = vpop.permute.xlu0 %913
    %v916 = vmul.f32 %v897, %v914
    %918 = vrot.lane.b32.xlu0 %v916, 32
    %v919 = vpop.permute.xlu0 %918
    %921 = vst.msk [vmem:[#allocation3 + $0x10] sm:$0xff] %vm143, %v919
    %v922 = vld [vmem:[#allocation2 + $0x20] sm:$0xff]
    %v923 = vpack.c.bf16 %v811, %v811
    %v924 = vld [vmem:[#allocation9] sm:$0xf]
    %v925 = vld [vmem:[#allocation9 + $0x4] sm:$0xf]
    %v926 = vld [vmem:[#allocation9 + $0x8] sm:$0xf]
    %v927 = vld [vmem:[#allocation9 + $0xc] sm:$0xf]
    %929 = vrot.lane.b32.xlu0 %v923, 32
    %v930 = vpop.permute.xlu0 %929
    %v935 = vunpack.c.l.b16 %v924
    %v936 = vunpack.c.l.b16 %v925
    %v937 = vunpack.c.l.b16 %v926
    %v938 = vunpack.c.l.b16 %v927
    %v939 = vpack.c.b16 %v936, %v935
    %v940 = vpack.c.b16 %v938, %v937
    %v944 = vsel %vm143, %v930, 0
    %946 = vmatprep.subr.bf16.mxu0 0
    %947 = vmatpush1.bf16.msra.mxu0 0
    %948 = vmatprep.subr.bf16.mxu0 0
    %949 = vmatpush1.bf16.msra.mxu0 0
    %950 = vmatprep.subr.bf16.mxu0 0
    %951 = vmatpush1.bf16.msra.mxu0 0
    %952 = vmatprep.subr.bf16.mxu0 0
    %953 = vmatpush1.bf16.msra.mxu0 0
    %954 = vmatprep.subr.bf16.mxu0 0
    %955 = vmatpush1.bf16.msra.mxu0 0
    %956 = vmatprep.subr.bf16.mxu0 0
    %957 = vmatpush1.bf16.msra.mxu0 0
    %958 = vmatprep.subr.bf16.mxu0 0
    %959 = vmatpush1.bf16.msra.mxu0 %v940
    %960 = vmatprep.subr.bf16.mxu0 0
    %961 = vmatpush1.bf16.msra.mxu0 %v939
    %962 = vmatprep.subr.bf16.mxu0 0
    %963 = vmatpush2.bf16.msra.mxu0 0
    %964 = vmatprep.subr.bf16.mxu0 0
    %965 = vmatpush2.bf16.msra.mxu0 0
    %966 = vmatprep.subr.bf16.mxu0 0
    %967 = vmatpush2.bf16.msra.mxu0 0
    %968 = vmatprep.subr.bf16.mxu0 0
    %969 = vmatpush2.bf16.msra.mxu0 0
    %970 = vmatprep.subr.bf16.mxu0 0
    %971 = vmatpush2.bf16.msra.mxu0 0
    %972 = vmatprep.subr.bf16.mxu0 0
    %973 = vmatpush2.bf16.msra.mxu0 0
    %974 = vmatprep.subr.bf16.mxu0 0
    %975 = vmatpush2.bf16.msra.mxu0 0
    %976 = vmatprep.subr.bf16.mxu0 0
    %977 = vmatpush2.bf16.msra.mxu0 0
    %978 = vmatprep.mubr.bf16.mxu0 0
    %979 = vmatmul.mubr.bf16.gmra.mxu0 %v944
    %v980 = vpop.f32.mrf.mxu0
    %v981 = vadd.f32 0.0, %v980
    %v982 = vpop.f32.mrf.mxu0
    %v983 = vpop.f32.mrf.mxu0
    %v984 = vpop.f32.mrf.mxu0
    %985 = vdwg.mxu0
    %v986 = vadd.f32 %v922, %v981
    %v987 = vxor.u32 %v986, 2147483648
    %v988 = vmul.f32 %v987, 1.442695
    %v989 = vpow.pop %v988
    %v990 = vadd.f32 %v989, 1.0
    %v991 = vrcp.pop %v990
    %v992 = vmul.f32 1.0, %v991
    %v993 = vmul.f32 %v992, 2.0
    %v994 = vsub.f32 %v993, 1.0
    %v995 = vmul.f32 %v992, %v805
    %997 = vrot.lane.b32.xlu0 %v994, 64
    %v998 = vpop.permute.xlu0 %997
    %v1000 = vmul.f32 %v992, %v998
    %1002 = vrot.lane.b32.xlu0 %v1000, 32
    %v1003 = vpop.permute.xlu0 %1002
    %v1005 = vadd.f32 %v995, %v1003
    %v1006 = vtanh.pop %v1005
    %1008 = vrot.lane.b32.xlu0 %v1006, 64
    %v1009 = vpop.permute.xlu0 %1008
    %v1011 = vmul.f32 %v992, %v1009
    %v1012 = vpack.c.bf16 %v916, %v916
    %1014 = vrot.lane.b32.xlu0 %v1012, 64
    %v1015 = vpop.permute.xlu0 %1014
    %v1017 = vsel %vm143, %v930, %v1015
    %v1018 = vld [vmem:[%s6] sm:$0xf]
    %v1019 = vld [vmem:[%s6 + $0x4] sm:$0xf]
    %v1020 = vld [vmem:[%s6 + $0x8] sm:$0xf]
    %v1021 = vld [vmem:[%s6 + $0xc] sm:$0xf]
    %v1022 = vld [vmem:[%s6 + $0x10] sm:$0xf]
    %v1023 = vld [vmem:[%s6 + $0x14] sm:$0xf]
    %v1024 = vld [vmem:[%s6 + $0x18] sm:$0xf]
    %v1025 = vld [vmem:[%s6 + $0x1c] sm:$0xf]
    %v1034 = vunpack.c.l.b16 %v1018
    %v1035 = vunpack.c.l.b16 %v1019
    %v1036 = vunpack.c.l.b16 %v1020
    %v1037 = vunpack.c.l.b16 %v1021
    %v1038 = vunpack.c.l.b16 %v1022
    %v1039 = vunpack.c.l.b16 %v1023
    %v1040 = vunpack.c.l.b16 %v1024
    %v1041 = vunpack.c.l.b16 %v1025
    %v1042 = vpack.c.b16 %v1035, %v1034
    %v1043 = vpack.c.b16 %v1037, %v1036
    %v1044 = vpack.c.b16 %v1039, %v1038
    %v1045 = vpack.c.b16 %v1041, %v1040
    %v1050 = vsel %vm445, %v1017, 0
    %1052 = vmatprep.subr.bf16.mxu0 0
    %1053 = vmatpush1.bf16.msra.mxu0 0
    %1054 = vmatprep.subr.bf16.mxu0 0
    %1055 = vmatpush1.bf16.msra.mxu0 0
    %1056 = vmatprep.subr.bf16.mxu0 0
    %1057 = vmatpush1.bf16.msra.mxu0 0
    %1058 = vmatprep.subr.bf16.mxu0 0
    %1059 = vmatpush1.bf16.msra.mxu0 0
    %1060 = vmatprep.subr.bf16.mxu0 0
    %1061 = vmatpush1.bf16.msra.mxu0 %v1045
    %1062 = vmatprep.subr.bf16.mxu0 0
    %1063 = vmatpush1.bf16.msra.mxu0 %v1044
    %1064 = vmatprep.subr.bf16.mxu0 0
    %1065 = vmatpush1.bf16.msra.mxu0 %v1043
    %1066 = vmatprep.subr.bf16.mxu0 0
    %1067 = vmatpush1.bf16.msra.mxu0 %v1042
    %1068 = vmatprep.subr.bf16.mxu0 0
    %1069 = vmatpush2.bf16.msra.mxu0 0
    %1070 = vmatprep.subr.bf16.mxu0 0
    %1071 = vmatpush2.bf16.msra.mxu0 0
    %1072 = vmatprep.subr.bf16.mxu0 0
    %1073 = vmatpush2.bf16.msra.mxu0 0
    %1074 = vmatprep.subr.bf16.mxu0 0
    %1075 = vmatpush2.bf16.msra.mxu0 0
    %1076 = vmatprep.subr.bf16.mxu0 0
    %1077 = vmatpush2.bf16.msra.mxu0 0
    %1078 = vmatprep.subr.bf16.mxu0 0
    %1079 = vmatpush2.bf16.msra.mxu0 0
    %1080 = vmatprep.subr.bf16.mxu0 0
    %1081 = vmatpush2.bf16.msra.mxu0 0
    %1082 = vmatprep.subr.bf16.mxu0 0
    %1083 = vmatpush2.bf16.msra.mxu0 0
    %1084 = vmatprep.mubr.bf16.mxu0 0
    %1085 = vmatmul.mubr.bf16.gmra.mxu0 %v1050
    %v1086 = vpop.f32.mrf.mxu0
    %v1087 = vadd.f32 %v419, %v1086
    %v1088 = vpop.f32.mrf.mxu0
    %v1089 = vpop.f32.mrf.mxu0
    %v1090 = vpop.f32.mrf.mxu0
    %1091 = vdwg.mxu0
    %v1092 = vxor.u32 %v1087, 2147483648
    %v1093 = vmul.f32 %v1092, 1.442695
    %v1094 = vpow.pop %v1093
    %v1095 = vadd.f32 %v1094, 1.0
    %v1096 = vrcp.pop %v1095
    %v1097 = vmul.f32 1.0, %v1096
    %v1098 = vmul.f32 %v1097, 2.0
    %v1099 = vsub.f32 %v1098, 1.0
    %v1100 = vmul.f32 %v1097, %v910
    %1102 = vrot.lane.b32.xlu0 %v1099, 64
    %v1103 = vpop.permute.xlu0 %1102
    %v1105 = vmul.f32 %v1097, %v1103
    %1107 = vrot.lane.b32.xlu0 %v1105, 32
    %v1108 = vpop.permute.xlu0 %1107
    %v1110 = vadd.f32 %v1100, %v1108
    %v1111 = vtanh.pop %v1110
    %1113 = vrot.lane.b32.xlu0 %v1111, 64
    %v1114 = vpop.permute.xlu0 %1113
    %v1116 = vmul.f32 %v1097, %v1114
    %1118 = vrot.lane.b32.xlu0 %v1116, 32
    %v1119 = vpop.permute.xlu0 %1118
    %1121 = vst.msk [vmem:[#allocation3 + $0x18] sm:$0xff] %vm143, %v1119
    %v1122 = vld [vmem:[#allocation2 + $0x28] sm:$0xff]
    %v1123 = vpack.c.bf16 %v1011, %v1011
    %v1124 = vld [vmem:[#allocation9] sm:$0xf]
    %v1125 = vld [vmem:[#allocation9 + $0x4] sm:$0xf]
    %v1126 = vld [vmem:[#allocation9 + $0x8] sm:$0xf]
    %v1127 = vld [vmem:[#allocation9 + $0xc] sm:$0xf]
    %1129 = vrot.lane.b32.xlu0 %v1123, 32
    %v1130 = vpop.permute.xlu0 %1129
    %v1135 = vunpack.c.l.b16 %v1124
    %v1136 = vunpack.c.l.b16 %v1125
    %v1137 = vunpack.c.l.b16 %v1126
    %v1138 = vunpack.c.l.b16 %v1127
    %v1139 = vpack.c.b16 %v1136, %v1135
    %v1140 = vpack.c.b16 %v1138, %v1137
    %v1144 = vsel %vm143, %v1130, 0
    %1146 = vmatprep.subr.bf16.mxu0 0
    %1147 = vmatpush1.bf16.msra.mxu0 0
    %1148 = vmatprep.subr.bf16.mxu0 0
    %1149 = vmatpush1.bf16.msra.mxu0 0
    %1150 = vmatprep.subr.bf16.mxu0 0
    %1151 = vmatpush1.bf16.msra.mxu0 0
    %1152 = vmatprep.subr.bf16.mxu0 0
    %1153 = vmatpush1.bf16.msra.mxu0 0
    %1154 = vmatprep.subr.bf16.mxu0 0
    %1155 = vmatpush1.bf16.msra.mxu0 0
    %1156 = vmatprep.subr.bf16.mxu0 0
    %1157 = vmatpush1.bf16.msra.mxu0 0
    %1158 = vmatprep.subr.bf16.mxu0 0
    %1159 = vmatpush1.bf16.msra.mxu0 %v1140
    %1160 = vmatprep.subr.bf16.mxu0 0
    %1161 = vmatpush1.bf16.msra.mxu0 %v1139
    %1162 = vmatprep.subr.bf16.mxu0 0
    %1163 = vmatpush2.bf16.msra.mxu0 0
    %1164 = vmatprep.subr.bf16.mxu0 0
    %1165 = vmatpush2.bf16.msra.mxu0 0
    %1166 = vmatprep.subr.bf16.mxu0 0
    %1167 = vmatpush2.bf16.msra.mxu0 0
    %1168 = vmatprep.subr.bf16.mxu0 0
    %1169 = vmatpush2.bf16.msra.mxu0 0
    %1170 = vmatprep.subr.bf16.mxu0 0
    %1171 = vmatpush2.bf16.msra.mxu0 0
    %1172 = vmatprep.subr.bf16.mxu0 0
    %1173 = vmatpush2.bf16.msra.mxu0 0
    %1174 = vmatprep.subr.bf16.mxu0 0
    %1175 = vmatpush2.bf16.msra.mxu0 0
    %1176 = vmatprep.subr.bf16.mxu0 0
    %1177 = vmatpush2.bf16.msra.mxu0 0
    %1178 = vmatprep.mubr.bf16.mxu0 0
    %1179 = vmatmul.mubr.bf16.gmra.mxu0 %v1144
    %v1180 = vpop.f32.mrf.mxu0
    %v1181 = vadd.f32 0.0, %v1180
    %v1182 = vpop.f32.mrf.mxu0
    %v1183 = vpop.f32.mrf.mxu0
    %v1184 = vpop.f32.mrf.mxu0
    %1185 = vdwg.mxu0
    %v1186 = vadd.f32 %v1122, %v1181
    %v1187 = vxor.u32 %v1186, 2147483648
    %v1188 = vmul.f32 %v1187, 1.442695
    %v1189 = vpow.pop %v1188
    %v1190 = vadd.f32 %v1189, 1.0
    %v1191 = vrcp.pop %v1190
    %v1192 = vmul.f32 1.0, %v1191
    %v1193 = vmul.f32 %v1192, 2.0
    %v1194 = vsub.f32 %v1193, 1.0
    %v1195 = vmul.f32 %v1192, %v1005
    %1197 = vrot.lane.b32.xlu0 %v1194, 64
    %v1198 = vpop.permute.xlu0 %1197
    %v1200 = vmul.f32 %v1192, %v1198
    %1202 = vrot.lane.b32.xlu0 %v1200, 32
    %v1203 = vpop.permute.xlu0 %1202
    %v1205 = vadd.f32 %v1195, %v1203
    %v1206 = vtanh.pop %v1205
    %1208 = vrot.lane.b32.xlu0 %v1206, 64
    %v1209 = vpop.permute.xlu0 %1208
    %v1211 = vmul.f32 %v1192, %v1209
    %v1212 = vpack.c.bf16 %v1116, %v1116
    %1214 = vrot.lane.b32.xlu0 %v1212, 64
    %v1215 = vpop.permute.xlu0 %1214
    %v1217 = vsel %vm143, %v1130, %v1215
    %v1218 = vld [vmem:[%s6] sm:$0xf]
    %v1219 = vld [vmem:[%s6 + $0x4] sm:$0xf]
    %v1220 = vld [vmem:[%s6 + $0x8] sm:$0xf]
    %v1221 = vld [vmem:[%s6 + $0xc] sm:$0xf]
    %v1222 = vld [vmem:[%s6 + $0x10] sm:$0xf]
    %v1223 = vld [vmem:[%s6 + $0x14] sm:$0xf]
    %v1224 = vld [vmem:[%s6 + $0x18] sm:$0xf]
    %v1225 = vld [vmem:[%s6 + $0x1c] sm:$0xf]
    %v1234 = vunpack.c.l.b16 %v1218
    %v1235 = vunpack.c.l.b16 %v1219
    %v1236 = vunpack.c.l.b16 %v1220
    %v1237 = vunpack.c.l.b16 %v1221
    %v1238 = vunpack.c.l.b16 %v1222
    %v1239 = vunpack.c.l.b16 %v1223
    %v1240 = vunpack.c.l.b16 %v1224
    %v1241 = vunpack.c.l.b16 %v1225
    %v1242 = vpack.c.b16 %v1235, %v1234
    %v1243 = vpack.c.b16 %v1237, %v1236
    %v1244 = vpack.c.b16 %v1239, %v1238
    %v1245 = vpack.c.b16 %v1241, %v1240
    %v1250 = vsel %vm445, %v1217, 0
    %1252 = vmatprep.subr.bf16.mxu0 0
    %1253 = vmatpush1.bf16.msra.mxu0 0
    %1254 = vmatprep.subr.bf16.mxu0 0
    %1255 = vmatpush1.bf16.msra.mxu0 0
    %1256 = vmatprep.subr.bf16.mxu0 0
    %1257 = vmatpush1.bf16.msra.mxu0 0
    %1258 = vmatprep.subr.bf16.mxu0 0
    %1259 = vmatpush1.bf16.msra.mxu0 0
    %1260 = vmatprep.subr.bf16.mxu0 0
    %1261 = vmatpush1.bf16.msra.mxu0 %v1245
    %1262 = vmatprep.subr.bf16.mxu0 0
    %1263 = vmatpush1.bf16.msra.mxu0 %v1244
    %1264 = vmatprep.subr.bf16.mxu0 0
    %1265 = vmatpush1.bf16.msra.mxu0 %v1243
    %1266 = vmatprep.subr.bf16.mxu0 0
    %1267 = vmatpush1.bf16.msra.mxu0 %v1242
    %1268 = vmatprep.subr.bf16.mxu0 0
    %1269 = vmatpush2.bf16.msra.mxu0 0
    %1270 = vmatprep.subr.bf16.mxu0 0
    %1271 = vmatpush2.bf16.msra.mxu0 0
    %1272 = vmatprep.subr.bf16.mxu0 0
    %1273 = vmatpush2.bf16.msra.mxu0 0
    %1274 = vmatprep.subr.bf16.mxu0 0
    %1275 = vmatpush2.bf16.msra.mxu0 0
    %1276 = vmatprep.subr.bf16.mxu0 0
    %1277 = vmatpush2.bf16.msra.mxu0 0
    %1278 = vmatprep.subr.bf16.mxu0 0
    %1279 = vmatpush2.bf16.msra.mxu0 0
    %1280 = vmatprep.subr.bf16.mxu0 0
    %1281 = vmatpush2.bf16.msra.mxu0 0
    %1282 = vmatprep.subr.bf16.mxu0 0
    %1283 = vmatpush2.bf16.msra.mxu0 0
    %1284 = vmatprep.mubr.bf16.mxu0 0
    %1285 = vmatmul.mubr.bf16.gmra.mxu0 %v1250
    %v1286 = vpop.f32.mrf.mxu0
    %v1287 = vadd.f32 %v419, %v1286
    %v1288 = vpop.f32.mrf.mxu0
    %v1289 = vpop.f32.mrf.mxu0
    %v1290 = vpop.f32.mrf.mxu0
    %1291 = vdwg.mxu0
    %v1292 = vxor.u32 %v1287, 2147483648
    %v1293 = vmul.f32 %v1292, 1.442695
    %v1294 = vpow.pop %v1293
    %v1295 = vadd.f32 %v1294, 1.0
    %v1296 = vrcp.pop %v1295
    %v1297 = vmul.f32 1.0, %v1296
    %v1298 = vmul.f32 %v1297, 2.0
    %v1299 = vsub.f32 %v1298, 1.0
    %v1300 = vmul.f32 %v1297, %v1110
    %1302 = vrot.lane.b32.xlu0 %v1299, 64
    %v1303 = vpop.permute.xlu0 %1302
    %v1305 = vmul.f32 %v1297, %v1303
    %1307 = vrot.lane.b32.xlu0 %v1305, 32
    %v1308 = vpop.permute.xlu0 %1307
    %v1310 = vadd.f32 %v1300, %v1308
    %v1311 = vtanh.pop %v1310
    %1313 = vrot.lane.b32.xlu0 %v1311, 64
    %v1314 = vpop.permute.xlu0 %1313
    %v1316 = vmul.f32 %v1297, %v1314
    %1318 = vrot.lane.b32.xlu0 %v1316, 32
    %v1319 = vpop.permute.xlu0 %1318
    %1321 = vst.msk [vmem:[#allocation3 + $0x20] sm:$0xff] %vm143, %v1319
    %v1322 = vld [vmem:[#allocation2 + $0x30] sm:$0xff]
    %v1323 = vpack.c.bf16 %v1211, %v1211
    %v1324 = vld [vmem:[#allocation9] sm:$0xf]
    %v1325 = vld [vmem:[#allocation9 + $0x4] sm:$0xf]
    %v1326 = vld [vmem:[#allocation9 + $0x8] sm:$0xf]
    %v1327 = vld [vmem:[#allocation9 + $0xc] sm:$0xf]
    %1329 = vrot.lane.b32.xlu0 %v1323, 32
    %v1330 = vpop.permute.xlu0 %1329
    %v1335 = vunpack.c.l.b16 %v1324
    %v1336 = vunpack.c.l.b16 %v1325
    %v1337 = vunpack.c.l.b16 %v1326
    %v1338 = vunpack.c.l.b16 %v1327
    %v1339 = vpack.c.b16 %v1336, %v1335
    %v1340 = vpack.c.b16 %v1338, %v1337
    %v1344 = vsel %vm143, %v1330, 0
    %1346 = vmatprep.subr.bf16.mxu0 0
    %1347 = vmatpush1.bf16.msra.mxu0 0
    %1348 = vmatprep.subr.bf16.mxu0 0
    %1349 = vmatpush1.bf16.msra.mxu0 0
    %1350 = vmatprep.subr.bf16.mxu0 0
    %1351 = vmatpush1.bf16.msra.mxu0 0
    %1352 = vmatprep.subr.bf16.mxu0 0
    %1353 = vmatpush1.bf16.msra.mxu0 0
    %1354 = vmatprep.subr.bf16.mxu0 0
    %1355 = vmatpush1.bf16.msra.mxu0 0
    %1356 = vmatprep.subr.bf16.mxu0 0
    %1357 = vmatpush1.bf16.msra.mxu0 0
    %1358 = vmatprep.subr.bf16.mxu0 0
    %1359 = vmatpush1.bf16.msra.mxu0 %v1340
    %1360 = vmatprep.subr.bf16.mxu0 0
    %1361 = vmatpush1.bf16.msra.mxu0 %v1339
    %1362 = vmatprep.subr.bf16.mxu0 0
    %1363 = vmatpush2.bf16.msra.mxu0 0
    %1364 = vmatprep.subr.bf16.mxu0 0
    %1365 = vmatpush2.bf16.msra.mxu0 0
    %1366 = vmatprep.subr.bf16.mxu0 0
    %1367 = vmatpush2.bf16.msra.mxu0 0
    %1368 = vmatprep.subr.bf16.mxu0 0
    %1369 = vmatpush2.bf16.msra.mxu0 0
    %1370 = vmatprep.subr.bf16.mxu0 0
    %1371 = vmatpush2.bf16.msra.mxu0 0
    %1372 = vmatprep.subr.bf16.mxu0 0
    %1373 = vmatpush2.bf16.msra.mxu0 0
    %1374 = vmatprep.subr.bf16.mxu0 0
    %1375 = vmatpush2.bf16.msra.mxu0 0
    %1376 = vmatprep.subr.bf16.mxu0 0
    %1377 = vmatpush2.bf16.msra.mxu0 0
    %1378 = vmatprep.mubr.bf16.mxu0 0
    %1379 = vmatmul.mubr.bf16.gmra.mxu0 %v1344
    %v1380 = vpop.f32.mrf.mxu0
    %v1381 = vadd.f32 0.0, %v1380
    %v1382 = vpop.f32.mrf.mxu0
    %v1383 = vpop.f32.mrf.mxu0
    %v1384 = vpop.f32.mrf.mxu0
    %1385 = vdwg.mxu0
    %v1386 = vadd.f32 %v1322, %v1381
    %v1387 = vxor.u32 %v1386, 2147483648
    %v1388 = vmul.f32 %v1387, 1.442695
    %v1389 = vpow.pop %v1388
    %v1390 = vadd.f32 %v1389, 1.0
    %v1391 = vrcp.pop %v1390
    %v1392 = vmul.f32 1.0, %v1391
    %v1393 = vmul.f32 %v1392, 2.0
    %v1394 = vsub.f32 %v1393, 1.0
    %v1395 = vmul.f32 %v1392, %v1205
    %1397 = vrot.lane.b32.xlu0 %v1394, 64
    %v1398 = vpop.permute.xlu0 %1397
    %v1400 = vmul.f32 %v1392, %v1398
    %1402 = vrot.lane.b32.xlu0 %v1400, 32
    %v1403 = vpop.permute.xlu0 %1402
    %v1405 = vadd.f32 %v1395, %v1403
    %v1406 = vtanh.pop %v1405
    %1408 = vrot.lane.b32.xlu0 %v1406, 64
    %v1409 = vpop.permute.xlu0 %1408
    %v1411 = vmul.f32 %v1392, %v1409
    %v1412 = vpack.c.bf16 %v1316, %v1316
    %1414 = vrot.lane.b32.xlu0 %v1412, 64
    %v1415 = vpop.permute.xlu0 %1414
    %v1417 = vsel %vm143, %v1330, %v1415
    %v1418 = vld [vmem:[%s6] sm:$0xf]
    %v1419 = vld [vmem:[%s6 + $0x4] sm:$0xf]
    %v1420 = vld [vmem:[%s6 + $0x8] sm:$0xf]
    %v1421 = vld [vmem:[%s6 + $0xc] sm:$0xf]
    %v1422 = vld [vmem:[%s6 + $0x10] sm:$0xf]
    %v1423 = vld [vmem:[%s6 + $0x14] sm:$0xf]
    %v1424 = vld [vmem:[%s6 + $0x18] sm:$0xf]
    %v1425 = vld [vmem:[%s6 + $0x1c] sm:$0xf]
    %v1434 = vunpack.c.l.b16 %v1418
    %v1435 = vunpack.c.l.b16 %v1419
    %v1436 = vunpack.c.l.b16 %v1420
    %v1437 = vunpack.c.l.b16 %v1421
    %v1438 = vunpack.c.l.b16 %v1422
    %v1439 = vunpack.c.l.b16 %v1423
    %v1440 = vunpack.c.l.b16 %v1424
    %v1441 = vunpack.c.l.b16 %v1425
    %v1442 = vpack.c.b16 %v1435, %v1434
    %v1443 = vpack.c.b16 %v1437, %v1436
    %v1444 = vpack.c.b16 %v1439, %v1438
    %v1445 = vpack.c.b16 %v1441, %v1440
    %v1450 = vsel %vm445, %v1417, 0
    %1452 = vmatprep.subr.bf16.mxu0 0
    %1453 = vmatpush1.bf16.msra.mxu0 0
    %1454 = vmatprep.subr.bf16.mxu0 0
    %1455 = vmatpush1.bf16.msra.mxu0 0
    %1456 = vmatprep.subr.bf16.mxu0 0
    %1457 = vmatpush1.bf16.msra.mxu0 0
    %1458 = vmatprep.subr.bf16.mxu0 0
    %1459 = vmatpush1.bf16.msra.mxu0 0
    %1460 = vmatprep.subr.bf16.mxu0 0
    %1461 = vmatpush1.bf16.msra.mxu0 %v1445
    %1462 = vmatprep.subr.bf16.mxu0 0
    %1463 = vmatpush1.bf16.msra.mxu0 %v1444
    %1464 = vmatprep.subr.bf16.mxu0 0
    %1465 = vmatpush1.bf16.msra.mxu0 %v1443
    %1466 = vmatprep.subr.bf16.mxu0 0
    %1467 = vmatpush1.bf16.msra.mxu0 %v1442
    %1468 = vmatprep.subr.bf16.mxu0 0
    %1469 = vmatpush2.bf16.msra.mxu0 0
    %1470 = vmatprep.subr.bf16.mxu0 0
    %1471 = vmatpush2.bf16.msra.mxu0 0
    %1472 = vmatprep.subr.bf16.mxu0 0
    %1473 = vmatpush2.bf16.msra.mxu0 0
    %1474 = vmatprep.subr.bf16.mxu0 0
    %1475 = vmatpush2.bf16.msra.mxu0 0
    %1476 = vmatprep.subr.bf16.mxu0 0
    %1477 = vmatpush2.bf16.msra.mxu0 0
    %1478 = vmatprep.subr.bf16.mxu0 0
    %1479 = vmatpush2.bf16.msra.mxu0 0
    %1480 = vmatprep.subr.bf16.mxu0 0
    %1481 = vmatpush2.bf16.msra.mxu0 0
    %1482 = vmatprep.subr.bf16.mxu0 0
    %1483 = vmatpush2.bf16.msra.mxu0 0
    %1484 = vmatprep.mubr.bf16.mxu0 0
    %1485 = vmatmul.mubr.bf16.gmra.mxu0 %v1450
    %v1486 = vpop.f32.mrf.mxu0
    %v1487 = vadd.f32 %v419, %v1486
    %v1488 = vpop.f32.mrf.mxu0
    %v1489 = vpop.f32.mrf.mxu0
    %v1490 = vpop.f32.mrf.mxu0
    %1491 = vdwg.mxu0
    %v1492 = vxor.u32 %v1487, 2147483648
    %v1493 = vmul.f32 %v1492, 1.442695
    %v1494 = vpow.pop %v1493
    %v1495 = vadd.f32 %v1494, 1.0
    %v1496 = vrcp.pop %v1495
    %v1497 = vmul.f32 1.0, %v1496
    %v1498 = vmul.f32 %v1497, 2.0
    %v1499 = vsub.f32 %v1498, 1.0
    %v1500 = vmul.f32 %v1497, %v1310
    %1502 = vrot.lane.b32.xlu0 %v1499, 64
    %v1503 = vpop.permute.xlu0 %1502
    %v1505 = vmul.f32 %v1497, %v1503
    %1507 = vrot.lane.b32.xlu0 %v1505, 32
    %v1508 = vpop.permute.xlu0 %1507
    %v1510 = vadd.f32 %v1500, %v1508
    %v1511 = vtanh.pop %v1510
    %1513 = vrot.lane.b32.xlu0 %v1511, 64
    %v1514 = vpop.permute.xlu0 %1513
    %v1516 = vmul.f32 %v1497, %v1514
    %1518 = vrot.lane.b32.xlu0 %v1516, 32
    %v1519 = vpop.permute.xlu0 %1518
    %1521 = vst.msk [vmem:[#allocation3 + $0x28] sm:$0xff] %vm143, %v1519
    %v1522 = vld [vmem:[#allocation2 + $0x38] sm:$0xff]
    %v1523 = vpack.c.bf16 %v1411, %v1411
    %v1524 = vld [vmem:[#allocation9] sm:$0xf]
    %v1525 = vld [vmem:[#allocation9 + $0x4] sm:$0xf]
    %v1526 = vld [vmem:[#allocation9 + $0x8] sm:$0xf]
    %v1527 = vld [vmem:[#allocation9 + $0xc] sm:$0xf]
    %1529 = vrot.lane.b32.xlu0 %v1523, 32
    %v1530 = vpop.permute.xlu0 %1529
    %v1535 = vunpack.c.l.b16 %v1524
    %v1536 = vunpack.c.l.b16 %v1525
    %v1537 = vunpack.c.l.b16 %v1526
    %v1538 = vunpack.c.l.b16 %v1527
    %v1539 = vpack.c.b16 %v1536, %v1535
    %v1540 = vpack.c.b16 %v1538, %v1537
    %v1544 = vsel %vm143, %v1530, 0
    %1546 = vmatprep.subr.bf16.mxu0 0
    %1547 = vmatpush1.bf16.msra.mxu0 0
    %1548 = vmatprep.subr.bf16.mxu0 0
    %1549 = vmatpush1.bf16.msra.mxu0 0
    %1550 = vmatprep.subr.bf16.mxu0 0
    %1551 = vmatpush1.bf16.msra.mxu0 0
    %1552 = vmatprep.subr.bf16.mxu0 0
    %1553 = vmatpush1.bf16.msra.mxu0 0
    %1554 = vmatprep.subr.bf16.mxu0 0
    %1555 = vmatpush1.bf16.msra.mxu0 0
    %1556 = vmatprep.subr.bf16.mxu0 0
    %1557 = vmatpush1.bf16.msra.mxu0 0
    %1558 = vmatprep.subr.bf16.mxu0 0
    %1559 = vmatpush1.bf16.msra.mxu0 %v1540
    %1560 = vmatprep.subr.bf16.mxu0 0
    %1561 = vmatpush1.bf16.msra.mxu0 %v1539
    %1562 = vmatprep.subr.bf16.mxu0 0
    %1563 = vmatpush2.bf16.msra.mxu0 0
    %1564 = vmatprep.subr.bf16.mxu0 0
    %1565 = vmatpush2.bf16.msra.mxu0 0
    %1566 = vmatprep.subr.bf16.mxu0 0
    %1567 = vmatpush2.bf16.msra.mxu0 0
    %1568 = vmatprep.subr.bf16.mxu0 0
    %1569 = vmatpush2.bf16.msra.mxu0 0
    %1570 = vmatprep.subr.bf16.mxu0 0
    %1571 = vmatpush2.bf16.msra.mxu0 0
    %1572 = vmatprep.subr.bf16.mxu0 0
    %1573 = vmatpush2.bf16.msra.mxu0 0
    %1574 = vmatprep.subr.bf16.mxu0 0
    %1575 = vmatpush2.bf16.msra.mxu0 0
    %1576 = vmatprep.subr.bf16.mxu0 0
    %1577 = vmatpush2.bf16.msra.mxu0 0
    %1578 = vmatprep.mubr.bf16.mxu0 0
    %1579 = vmatmul.mubr.bf16.gmra.mxu0 %v1544
    %v1580 = vpop.f32.mrf.mxu0
    %v1581 = vadd.f32 0.0, %v1580
    %v1582 = vpop.f32.mrf.mxu0
    %v1583 = vpop.f32.mrf.mxu0
    %v1584 = vpop.f32.mrf.mxu0
    %1585 = vdwg.mxu0
    %v1586 = vadd.f32 %v1522, %v1581
    %v1587 = vxor.u32 %v1586, 2147483648
    %v1588 = vmul.f32 %v1587, 1.442695
    %v1589 = vpow.pop %v1588
    %v1590 = vadd.f32 %v1589, 1.0
    %v1591 = vrcp.pop %v1590
    %v1592 = vmul.f32 1.0, %v1591
    %v1593 = vmul.f32 %v1592, 2.0
    %v1594 = vsub.f32 %v1593, 1.0
    %v1595 = vmul.f32 %v1592, %v1405
    %1597 = vrot.lane.b32.xlu0 %v1594, 64
    %v1598 = vpop.permute.xlu0 %1597
    %v1600 = vmul.f32 %v1592, %v1598
    %1602 = vrot.lane.b32.xlu0 %v1600, 32
    %v1603 = vpop.permute.xlu0 %1602
    %v1605 = vadd.f32 %v1595, %v1603
    %v1606 = vtanh.pop %v1605
    %1608 = vrot.lane.b32.xlu0 %v1606, 64
    %v1609 = vpop.permute.xlu0 %1608
    %v1611 = vmul.f32 %v1592, %v1609
    %v1612 = vpack.c.bf16 %v1516, %v1516
    %1614 = vrot.lane.b32.xlu0 %v1612, 64
    %v1615 = vpop.permute.xlu0 %1614
    %v1617 = vsel %vm143, %v1530, %v1615
    %v1618 = vld [vmem:[%s6] sm:$0xf]
    %v1619 = vld [vmem:[%s6 + $0x4] sm:$0xf]
    %v1620 = vld [vmem:[%s6 + $0x8] sm:$0xf]
    %v1621 = vld [vmem:[%s6 + $0xc] sm:$0xf]
    %v1622 = vld [vmem:[%s6 + $0x10] sm:$0xf]
    %v1623 = vld [vmem:[%s6 + $0x14] sm:$0xf]
    %v1624 = vld [vmem:[%s6 + $0x18] sm:$0xf]
    %v1625 = vld [vmem:[%s6 + $0x1c] sm:$0xf]
    %v1634 = vunpack.c.l.b16 %v1618
    %v1635 = vunpack.c.l.b16 %v1619
    %v1636 = vunpack.c.l.b16 %v1620
    %v1637 = vunpack.c.l.b16 %v1621
    %v1638 = vunpack.c.l.b16 %v1622
    %v1639 = vunpack.c.l.b16 %v1623
    %v1640 = vunpack.c.l.b16 %v1624
    %v1641 = vunpack.c.l.b16 %v1625
    %v1642 = vpack.c.b16 %v1635, %v1634
    %v1643 = vpack.c.b16 %v1637, %v1636
    %v1644 = vpack.c.b16 %v1639, %v1638
    %v1645 = vpack.c.b16 %v1641, %v1640
    %v1650 = vsel %vm445, %v1617, 0
    %1652 = vmatprep.subr.bf16.mxu0 0
    %1653 = vmatpush1.bf16.msra.mxu0 0
    %1654 = vmatprep.subr.bf16.mxu0 0
    %1655 = vmatpush1.bf16.msra.mxu0 0
    %1656 = vmatprep.subr.bf16.mxu0 0
    %1657 = vmatpush1.bf16.msra.mxu0 0
    %1658 = vmatprep.subr.bf16.mxu0 0
    %1659 = vmatpush1.bf16.msra.mxu0 0
    %1660 = vmatprep.subr.bf16.mxu0 0
    %1661 = vmatpush1.bf16.msra.mxu0 %v1645
    %1662 = vmatprep.subr.bf16.mxu0 0
    %1663 = vmatpush1.bf16.msra.mxu0 %v1644
    %1664 = vmatprep.subr.bf16.mxu0 0
    %1665 = vmatpush1.bf16.msra.mxu0 %v1643
    %1666 = vmatprep.subr.bf16.mxu0 0
    %1667 = vmatpush1.bf16.msra.mxu0 %v1642
    %1668 = vmatprep.subr.bf16.mxu0 0
    %1669 = vmatpush2.bf16.msra.mxu0 0
    %1670 = vmatprep.subr.bf16.mxu0 0
    %1671 = vmatpush2.bf16.msra.mxu0 0
    %1672 = vmatprep.subr.bf16.mxu0 0
    %1673 = vmatpush2.bf16.msra.mxu0 0
    %1674 = vmatprep.subr.bf16.mxu0 0
    %1675 = vmatpush2.bf16.msra.mxu0 0
    %1676 = vmatprep.subr.bf16.mxu0 0
    %1677 = vmatpush2.bf16.msra.mxu0 0
    %1678 = vmatprep.subr.bf16.mxu0 0
    %1679 = vmatpush2.bf16.msra.mxu0 0
    %1680 = vmatprep.subr.bf16.mxu0 0
    %1681 = vmatpush2.bf16.msra.mxu0 0
    %1682 = vmatprep.subr.bf16.mxu0 0
    %1683 = vmatpush2.bf16.msra.mxu0 0
    %1684 = vmatprep.mubr.bf16.mxu0 0
    %1685 = vmatmul.mubr.bf16.gmra.mxu0 %v1650
    %v1686 = vpop.f32.mrf.mxu0
    %v1687 = vadd.f32 %v419, %v1686
    %v1688 = vpop.f32.mrf.mxu0
    %v1689 = vpop.f32.mrf.mxu0
    %v1690 = vpop.f32.mrf.mxu0
    %1691 = vdwg.mxu0
    %v1692 = vxor.u32 %v1687, 2147483648
    %v1693 = vmul.f32 %v1692, 1.442695
    %v1694 = vpow.pop %v1693
    %v1695 = vadd.f32 %v1694, 1.0
    %v1696 = vrcp.pop %v1695
    %v1697 = vmul.f32 1.0, %v1696
    %v1698 = vmul.f32 %v1697, 2.0
    %v1699 = vsub.f32 %v1698, 1.0
    %v1700 = vmul.f32 %v1697, %v1510
    %1702 = vrot.lane.b32.xlu0 %v1699, 64
    %v1703 = vpop.permute.xlu0 %1702
    %v1705 = vmul.f32 %v1697, %v1703
    %1707 = vrot.lane.b32.xlu0 %v1705, 32
    %v1708 = vpop.permute.xlu0 %1707
    %v1710 = vadd.f32 %v1700, %v1708
    %v1711 = vtanh.pop %v1710
    %1713 = vrot.lane.b32.xlu0 %v1711, 64
    %v1714 = vpop.permute.xlu0 %1713
    %v1716 = vmul.f32 %v1697, %v1714
    %1718 = vrot.lane.b32.xlu0 %v1716, 32
    %v1719 = vpop.permute.xlu0 %1718
    %1721 = vst.msk [vmem:[#allocation3 + $0x30] sm:$0xff] %vm143, %v1719
    %v1722 = vpack.c.bf16 %v1611, %v1611
    %v1723 = vpack.c.bf16 %v1716, %v1716
    %1725 = vrot.lane.b32.xlu0 %v1722, 32
    %v1726 = vpop.permute.xlu0 %1725
    %1728 = vrot.lane.b32.xlu0 %v1723, 64
    %v1729 = vpop.permute.xlu0 %1728
    %v1732 = vsel %vm143, %v1726, %v1729
    %v1733 = vld [vmem:[%s6] sm:$0xf]
    %v1734 = vld [vmem:[%s6 + $0x4] sm:$0xf]
    %v1735 = vld [vmem:[%s6 + $0x8] sm:$0xf]
    %v1736 = vld [vmem:[%s6 + $0xc] sm:$0xf]
    %v1737 = vld [vmem:[%s6 + $0x10] sm:$0xf]
    %v1738 = vld [vmem:[%s6 + $0x14] sm:$0xf]
    %v1739 = vld [vmem:[%s6 + $0x18] sm:$0xf]
    %v1740 = vld [vmem:[%s6 + $0x1c] sm:$0xf]
    %v1749 = vunpack.c.l.b16 %v1733
    %v1750 = vunpack.c.l.b16 %v1734
    %v1751 = vunpack.c.l.b16 %v1735
    %v1752 = vunpack.c.l.b16 %v1736
    %v1753 = vunpack.c.l.b16 %v1737
    %v1754 = vunpack.c.l.b16 %v1738
    %v1755 = vunpack.c.l.b16 %v1739
    %v1756 = vunpack.c.l.b16 %v1740
    %v1757 = vpack.c.b16 %v1750, %v1749
    %v1758 = vpack.c.b16 %v1752, %v1751
    %v1759 = vpack.c.b16 %v1754, %v1753
    %v1760 = vpack.c.b16 %v1756, %v1755
    %v1765 = vsel %vm445, %v1732, 0
    %1767 = vmatprep.subr.bf16.mxu0 0
    %1768 = vmatpush1.bf16.msra.mxu0 0
    %1769 = vmatprep.subr.bf16.mxu0 0
    %1770 = vmatpush1.bf16.msra.mxu0 0
    %1771 = vmatprep.subr.bf16.mxu0 0
    %1772 = vmatpush1.bf16.msra.mxu0 0
    %1773 = vmatprep.subr.bf16.mxu0 0
    %1774 = vmatpush1.bf16.msra.mxu0 0
    %1775 = vmatprep.subr.bf16.mxu0 0
    %1776 = vmatpush1.bf16.msra.mxu0 %v1760
    %1777 = vmatprep.subr.bf16.mxu0 0
    %1778 = vmatpush1.bf16.msra.mxu0 %v1759
    %1779 = vmatprep.subr.bf16.mxu0 0
    %1780 = vmatpush1.bf16.msra.mxu0 %v1758
    %1781 = vmatprep.subr.bf16.mxu0 0
    %1782 = vmatpush1.bf16.msra.mxu0 %v1757
    %1783 = vmatprep.subr.bf16.mxu0 0
    %1784 = vmatpush2.bf16.msra.mxu0 0
    %1785 = vmatprep.subr.bf16.mxu0 0
    %1786 = vmatpush2.bf16.msra.mxu0 0
    %1787 = vmatprep.subr.bf16.mxu0 0
    %1788 = vmatpush2.bf16.msra.mxu0 0
    %1789 = vmatprep.subr.bf16.mxu0 0
    %1790 = vmatpush2.bf16.msra.mxu0 0
    %1791 = vmatprep.subr.bf16.mxu0 0
    %1792 = vmatpush2.bf16.msra.mxu0 0
    %1793 = vmatprep.subr.bf16.mxu0 0
    %1794 = vmatpush2.bf16.msra.mxu0 0
    %1795 = vmatprep.subr.bf16.mxu0 0
    %1796 = vmatpush2.bf16.msra.mxu0 0
    %1797 = vmatprep.subr.bf16.mxu0 0
    %1798 = vmatpush2.bf16.msra.mxu0 0
    %1799 = vmatprep.mubr.bf16.mxu0 0
    %1800 = vmatmul.mubr.bf16.gmra.mxu0 %v1765
    %v1801 = vpop.f32.mrf.mxu0
    %v1802 = vadd.f32 %v419, %v1801
    %v1803 = vpop.f32.mrf.mxu0
    %v1804 = vpop.f32.mrf.mxu0
    %v1805 = vpop.f32.mrf.mxu0
    %1806 = vdwg.mxu0
    %v1807 = vxor.u32 %v1802, 2147483648
    %v1808 = vmul.f32 %v1807, 1.442695
    %v1809 = vpow.pop %v1808
    %v1810 = vadd.f32 %v1809, 1.0
    %v1811 = vrcp.pop %v1810
    %v1812 = vmul.f32 1.0, %v1811
    %v1813 = vmul.f32 %v1812, 2.0
    %v1814 = vsub.f32 %v1813, 1.0
    %v1815 = vmul.f32 %v1812, %v1710
    %1817 = vrot.lane.b32.xlu0 %v1814, 64
    %v1818 = vpop.permute.xlu0 %1817
    %v1820 = vmul.f32 %v1812, %v1818
    %1822 = vrot.lane.b32.xlu0 %v1820, 32
    %v1823 = vpop.permute.xlu0 %1822
    %v1825 = vadd.f32 %v1815, %v1823
    %v1826 = vtanh.pop %v1825
    %1828 = vrot.lane.b32.xlu0 %v1826, 64
    %v1829 = vpop.permute.xlu0 %1828
    %v1831 = vmul.f32 %v1812, %v1829
    %1833 = vrot.lane.b32.xlu0 %v1831, 32
    %v1834 = vpop.permute.xlu0 %1833
    %1836 = vst.msk [vmem:[#allocation3 + $0x38] sm:$0xff] %vm143, %v1834
    %v1837 = vld [vmem:[#allocation3] sm:$0xff]
    %v1838 = vld [vmem:[#allocation3 + $0x8] sm:$0xff]
    %v1839 = vld [vmem:[#allocation3 + $0x10] sm:$0xff]
    %v1840 = vld [vmem:[#allocation3 + $0x18] sm:$0xff]
    %v1841 = vld [vmem:[#allocation3 + $0x20] sm:$0xff]
    %v1842 = vld [vmem:[#allocation3 + $0x28] sm:$0xff]
    %v1843 = vld [vmem:[#allocation3 + $0x30] sm:$0xff]
    %v1844 = vld [vmem:[#allocation3 + $0x38] sm:$0xff]
    %v1845 = vpack.c.bf16 %v1838, %v1837
    %v1846 = vpack.c.bf16 %v1840, %v1839
    %v1847 = vpack.c.bf16 %v1842, %v1841
    %v1848 = vpack.c.bf16 %v1844, %v1843
    %v1849 = vld [vmem:[#allocation10] sm:$0xf]
    %v1850 = vld [vmem:[#allocation10 + $0x4] sm:$0xf]
    %v1851 = vld [vmem:[#allocation10 + $0x8] sm:$0xf]
    %v1852 = vld [vmem:[#allocation10 + $0xc] sm:$0xf]
    %v1853 = vld [vmem:[%s9] sm:$0x1]
    %v1855 = vlaneseq
    %v1856 = vshrl.u32 %v1855, 7
    %v1857 = vsub.s32 0, %v1856
    %v1858 = vrot.slane %v1853, %v1857
    %v1864 = vunpack.c.l.b16 %v1849
    %v1865 = vunpack.c.l.b16 %v1850
    %v1866 = vunpack.c.l.b16 %v1851
    %v1867 = vunpack.c.l.b16 %v1852
    %v1868 = vpack.c.b16 %v1865, %v1864
    %v1869 = vpack.c.b16 %v1867, %v1866
    %v1873 = vsel %vm143, %v1845, 0
    %v1876 = vsel %vm143, %v1846, 0
    %v1879 = vsel %vm143, %v1847, 0
    %v1882 = vsel %vm143, %v1848, 0
    %1884 = vmatprep.subr.bf16.mxu0 0
    %1885 = vmatpush1.bf16.msra.mxu0 0
    %1886 = vmatprep.subr.bf16.mxu0 0
    %1887 = vmatpush1.bf16.msra.mxu0 0
    %1888 = vmatprep.subr.bf16.mxu0 0
    %1889 = vmatpush1.bf16.msra.mxu0 0
    %1890 = vmatprep.subr.bf16.mxu0 0
    %1891 = vmatpush1.bf16.msra.mxu0 0
    %1892 = vmatprep.subr.bf16.mxu0 0
    %1893 = vmatpush1.bf16.msra.mxu0 0
    %1894 = vmatprep.subr.bf16.mxu0 0
    %1895 = vmatpush1.bf16.msra.mxu0 0
    %1896 = vmatprep.subr.bf16.mxu0 0
    %1897 = vmatpush1.bf16.msra.mxu0 %v1869
    %1898 = vmatprep.subr.bf16.mxu0 0
    %1899 = vmatpush1.bf16.msra.mxu0 %v1868
    %1900 = vmatprep.subr.bf16.mxu0 0
    %1901 = vmatpush2.bf16.msra.mxu0 0
    %1902 = vmatprep.subr.bf16.mxu0 0
    %1903 = vmatpush2.bf16.msra.mxu0 0
    %1904 = vmatprep.subr.bf16.mxu0 0
    %1905 = vmatpush2.bf16.msra.mxu0 0
    %1906 = vmatprep.subr.bf16.mxu0 0
    %1907 = vmatpush2.bf16.msra.mxu0 0
    %1908 = vmatprep.subr.bf16.mxu0 0
    %1909 = vmatpush2.bf16.msra.mxu0 0
    %1910 = vmatprep.subr.bf16.mxu0 0
    %1911 = vmatpush2.bf16.msra.mxu0 0
    %1912 = vmatprep.subr.bf16.mxu0 0
    %1913 = vmatpush2.bf16.msra.mxu0 0
    %1914 = vmatprep.subr.bf16.mxu0 0
    %1915 = vmatpush2.bf16.msra.mxu0 0
    %1916 = vmatprep.mubr.bf16.mxu0 0
    %1917 = vmatmul.mubr.bf16.gmra.mxu0 %v1873
    %v1918 = vpop.f32.mrf.mxu0
    %v1919 = vadd.f32 %v1858, %v1918
    %v1920 = vpop.f32.mrf.mxu0
    %v1921 = vpop.f32.mrf.mxu0
    %v1922 = vadd.f32 %v1858, %v1921
    %v1923 = vpop.f32.mrf.mxu0
    %1924 = vmatprep.mubr.bf16.mxu0 0
    %1925 = vmatmul.mubr.bf16.gmra.mxu0 %v1876
    %v1926 = vpop.f32.mrf.mxu0
    %v1927 = vadd.f32 %v1858, %v1926
    %v1928 = vpop.f32.mrf.mxu0
    %v1929 = vpop.f32.mrf.mxu0
    %v1930 = vadd.f32 %v1858, %v1929
    %v1931 = vpop.f32.mrf.mxu0
    %1932 = vmatprep.mubr.bf16.mxu0 0
    %1933 = vmatmul.mubr.bf16.gmra.mxu0 %v1879
    %v1934 = vpop.f32.mrf.mxu0
    %v1935 = vadd.f32 %v1858, %v1934
    %v1936 = vpop.f32.mrf.mxu0
    %v1937 = vpop.f32.mrf.mxu0
    %v1938 = vadd.f32 %v1858, %v1937
    %v1939 = vpop.f32.mrf.mxu0
    %1940 = vmatprep.mubr.bf16.mxu0 0
    %1941 = vmatmul.mubr.bf16.gmra.mxu0 %v1882
    %v1942 = vpop.f32.mrf.mxu0
    %v1943 = vadd.f32 %v1858, %v1942
    %v1944 = vpop.f32.mrf.mxu0
    %v1945 = vpop.f32.mrf.mxu0
    %v1946 = vadd.f32 %v1858, %v1945
    %v1947 = vpop.f32.mrf.mxu0
    %1948 = vdwg.mxu0
    %1949 = vst [vmem:[#allocation12] sm:$0xff] %v1919
    %1950 = vst [vmem:[#allocation12 + $0x8] sm:$0xff] %v1922
    %1951 = vst [vmem:[#allocation12 + $0x10] sm:$0xff] %v1927
    %1952 = vst [vmem:[#allocation12 + $0x18] sm:$0xff] %v1930
    %1953 = vst [vmem:[#allocation12 + $0x20] sm:$0xff] %v1935
    %1954 = vst [vmem:[#allocation12 + $0x28] sm:$0xff] %v1938
    %1955 = vst [vmem:[#allocation12 + $0x30] sm:$0xff] %v1943
    %1956 = vst [vmem:[#allocation12 + $0x38] sm:$0xff] %v1946
    // Predicated region
    $region58: #{tpu_custom_call.1} parent=1 // pred_check
      _
    $region59: #{tpu_custom_call.1} parent=1 // pred_check_branch
      %1958 = sbr.rel (0) target = $region61
    $region60: #{tpu_custom_call.1} parent=1 // pred_region
      %s1960 = ssub.s32 1024, 1024
      %1961 = vsyncadd [#allocation6], %s1960
      %s1962 = sshll.u32 [#allocation12], 4
      %s1963 = int_to_ptr.vmem [resolvable:$true] %s1962
      %1968 = dma.vmem_to_hbm [thread:$0]  %s1963, 1024, %s10, [#allocation6], 128, 128, 8
    $region61: #{tpu_custom_call.1} parent=1 // pred_fallthru
      _
    // Predicated region
    $region62: #{tpu_custom_call.1} parent=1 // pred_check
      _
    $region63: #{tpu_custom_call.1} parent=1 // pred_check_branch
      %1970 = sbr.rel (0) target = $region65
    $region64: #{tpu_custom_call.1} parent=1 // pred_region
      %1971 = dma.done [#allocation6], 1024
    $region65: #{tpu_custom_call.1} parent=1 // pred_fallthru
      _
    %1972 = vsyncpa [#allocation5], 1
    %1973 = vsyncpa [#allocation8], 1
    %1974 = vsyncpa [#allocation11], 1
    %1975 = vsyncpa [#allocation6], 1

</llo_original>
